<compile_context>
chip_gen: v7x
topology: tpu7x:2x2x1
jax: 0.10.0
libtpu: 0.0.40
codegen_flags: <defaults>
</compile_context>

<pallas_src>
import functools

import jax
import jax.numpy as jnp
from jax.experimental import pallas as pl
from jax.experimental.pallas import tpu as pltpu


# ----------------------------------------------------------------------------
# Kernel: one (batch, time-tile) grid step.
# ----------------------------------------------------------------------------
def _conv_mul_block_kernel(*refs, channels, kernel_size, dilation, pad,
                           tile_t, chunk_len, n_chunks_total, m_chunks,
                           rows_per_chunk, im2col, merge_out):
    C = channels
    res_ref, skip_ref = refs[-2], refs[-1]
    it = iter(refs[:-2])
    x_main_ref = next(it)
    x_halo_ref = next(it) if pad > 0 else None
    pose_ref = next(it)
    w_conv_ref, b_conv_ref = next(it), next(it)
    w_cmul_ref, b_cmul_ref = next(it), next(it)
    w_cadd_ref, b_cadd_ref = next(it), next(it)
    if merge_out:
        w_out_ref, b_out_ref = next(it), next(it)
    else:
        w_res_ref, w_skip_ref = next(it), next(it)
        b_res_ref, b_skip_ref = next(it), next(it)

    # ---- halo'd window: rows [t*Tt, t*Tt + Tt + 2*pad) of padded x ----------
    x_main = x_main_ref[0]                                        # (Tt, C)
    if pad > 0:
        xwin = jnp.concatenate([x_main, x_halo_ref[0, 0]], axis=0)  # (Tt+2p, C)
    else:
        xwin = x_main
    taps = [xwin[j * dilation: j * dilation + tile_t, :]
            for j in range(kernel_size)]                          # static slices

    # ---- dilated Conv1d(C -> 2C, k) on the MXU, f32 accumulation ------------
    if im2col:
        # small C: one matmul with the k taps stacked on the contraction axis
        xcat = taps[0] if kernel_size == 1 else jnp.concatenate(taps, axis=-1)
        y = jnp.dot(xcat, w_conv_ref[...], preferred_element_type=jnp.float32)
    else:
        # production C (>=128): k accumulated per-tap dots (no im2col copies)
        y = jnp.dot(taps[0], w_conv_ref[0:C, :],
                    preferred_element_type=jnp.float32)
        for j in range(1, kernel_size):
            y = y + jnp.dot(taps[j], w_conv_ref[j * C:(j + 1) * C, :],
                            preferred_element_type=jnp.float32)
    y = y + b_conv_ref[...]                                       # (Tt, 2C)

    # ---- per-chunk conditioning (1x1 cond_conv, mul/add halves pre-split) ---
    if m_chunks == n_chunks_total:        # single time tile -> all chunks
        pose_t = pose_ref[0]                                      # (K, P)
    else:
        chunk0 = (pl.program_id(1) * tile_t) // chunk_len
        pose_t = pose_ref[0, pl.ds(chunk0, m_chunks), :]          # (m, P)
    mul = jnp.exp(jnp.dot(pose_t, w_cmul_ref[...],
                          preferred_element_type=jnp.float32) + b_cmul_ref[...])
    add = (jnp.dot(pose_t, w_cadd_ref[...],
                   preferred_element_type=jnp.float32) + b_cadd_ref[...])

    if m_chunks == 1:
        y = y * mul + add                                         # (1,2C) bcast
    else:
        y = (y.reshape(m_chunks, rows_per_chunk, 2 * C) * mul[:, None, :]
             + add[:, None, :]).reshape(tile_t, 2 * C)

    # ---- gated activation (f32 on VPU/EUP) -----------------------------------
    g = jnp.tanh(y[:, :C]) * jax.nn.sigmoid(y[:, C:])             # (Tt, C)
    g = g.astype(w_out_ref.dtype if merge_out else w_res_ref.dtype)

    # ---- 1x1 out conv --------------------------------------------------------
    if merge_out:
        o = jnp.dot(g, w_out_ref[...], preferred_element_type=jnp.float32)
        o = o + b_out_ref[...]
        res, skip = o[:, :C], o[:, C:]     # column C is a 128-lane boundary
    else:
        res = (jnp.dot(g, w_res_ref[...], preferred_element_type=jnp.float32)
               + b_res_ref[...])
        skip = (jnp.dot(g, w_skip_ref[...], preferred_element_type=jnp.float32)
                + b_skip_ref[...])

    # ---- residual & stores ---------------------------------------------------
    # centre tap == the unpadded x rows of this tile (pad == dil*(k-1)//2)
    x_c = taps[(kernel_size - 1) // 2]
    res_ref[0] = ((res + x_c) * 0.5).astype(res_ref.dtype)
    skip_ref[0] = skip.astype(skip_ref.dtype)


# ----------------------------------------------------------------------------
# Helpers
# ----------------------------------------------------------------------------
def _pick_time_tile(T, L, K, target=512):
    """Largest tile <= target that divides T, is compatible with the K-chunk
    conditioning structure (a multiple of L or a divisor of L) and satisfies
    the Pallas (8,128) block rule (multiple of 8, unless it equals T)."""
    if T <= target:
        return T
    # whole chunks per tile: Tt = m*L with m | K
    for m in range(K, 0, -1):
        tt = m * L
        if K % m == 0 and tt <= target and tt % 8 == 0:
            return tt
    # tile within a chunk: Tt | L
    if L > target:
        tt = target - target % 8
        while tt >= 8:
            if L % tt == 0:
                return tt
            tt -= 8
    return T   # safe fallback: single time tile


def _vmem_limit_bytes():
    """Per-generation VMEM budget: never claim all physical VMEM (v7x has only
    64 MiB/TC); leave headroom for Mosaic scratch and the pipeline buffers."""
    try:
        cap = pltpu.get_tpu_info().vmem_capacity_bytes
    except Exception:
        cap = None
    if cap is None or cap <= 64 * 1024 * 1024:
        return 52 * 1024 * 1024          # v7x (or unknown): conservative
    return 100 * 1024 * 1024             # v5e / v6e: 128 MiB physical


# ----------------------------------------------------------------------------
# Wrapper: layout transposes, weight re-stacking, tiling, pallas_call.
# ----------------------------------------------------------------------------
def conv_mul_block(x, pose_dome, params, *, channels, kernel_size=3,
                   dilation=1, causal=False, time_tile=512):
    """x: (B, C, T), pose_dome: (B, P, K)   (PyTorch NCL layout)."""
    B, C, T = x.shape
    _, P, K = pose_dome.shape
    assert C == channels
    if T % K != 0:
        raise ValueError("x time length must be a multiple of pose_dome chunks")
    if causal:
        raise ValueError(
            "causal=True pads by dilation*(k-1) on both sides in the reference "
            "module, so the conv output is longer than x and `res + x` fails; "
            "only causal=False ('same' conv) is supported.")
    if kernel_size % 2 == 0:
        raise ValueError("only odd kernel_size keeps the conv output length "
                         "equal to the input length with 'same' padding")

    pad = (dilation * (kernel_size - 1)) // 2
    L = T // K                               # timesteps per conditioning chunk

    Tt = _pick_time_tile(T, L, K, target=time_tile)
    n_t = T // Tt
    if Tt % L == 0:
        m_chunks, rows_per_chunk = Tt // L, L
    else:
        assert L % Tt == 0
        m_chunks, rows_per_chunk = 1, Tt

    # NCL -> NLC (channels on lanes); pad time once in the wrapper.
    x_tc = jnp.transpose(x, (0, 2, 1))                            # (B, T, C)
    x_pad = jnp.pad(x_tc, ((0, 0), (pad, pad), (0, 0))) if pad else x_tc
    x_main = x_pad[:, :T, :]                                      # (B, T, C)
    pose_tc = jnp.transpose(pose_dome, (0, 2, 1))                 # (B, K, P)

    # PyTorch Conv1d weights -> kernel-friendly layouts (native dtype, no
    # f32 upcast: bf16 weights stay bf16 and hit the MXU natively).
    w_conv = jnp.transpose(params["w_conv"], (2, 1, 0)).reshape(
        kernel_size * C, 2 * C)                                   # (k*C, 2C)
    b_conv = params["b_conv"].reshape(1, 2 * C)
    w_cond = jnp.transpose(params["w_cond"][:, :, 0], (1, 0))     # (P, 4C)
    w_cmul, w_cadd = w_cond[:, :2 * C], w_cond[:, 2 * C:]         # (P, 2C) x2
    b_cmul = params["b_cond"][:2 * C].reshape(1, 2 * C)
    b_cadd = params["b_cond"][2 * C:].reshape(1, 2 * C)
    w_out = jnp.transpose(params["w_out"][:, :, 0], (1, 0))       # (C, 2C)
    b_out = params["b_out"].reshape(1, 2 * C)

    im2col = C < 128           # small C: fuse taps on the contraction axis
    merge_out = (C % 128 == 0)  # full-width MXU + free column-C slice

    inputs = [x_main]
    in_specs = [pl.BlockSpec((1, Tt, C), lambda b, t: (b, t, 0))]
    if pad > 0:
        # tail-halo rows of each tile's window: x_pad[(t+1)*Tt : (t+1)*Tt+2p]
        x_halo = jnp.stack(
            [x_pad[:, (t + 1) * Tt:(t + 1) * Tt + 2 * pad, :] for t in range(n_t)],
            axis=1)                                               # (B,n_t,2p,C)
        inputs.append(x_halo)
        in_specs.append(pl.BlockSpec((1, 1, 2 * pad, C),
                                     lambda b, t: (b, t, 0, 0)))
    inputs += [pose_tc, w_conv, b_conv, w_cmul, b_cmul, w_cadd, b_cadd]
    in_specs += [
        pl.BlockSpec((1, K, P), lambda b, t: (b, 0, 0)),
        pl.BlockSpec((kernel_size * C, 2 * C), lambda b, t: (0, 0)),
        pl.BlockSpec((1, 2 * C), lambda b, t: (0, 0)),
        pl.BlockSpec((P, 2 * C), lambda b, t: (0, 0)),
        pl.BlockSpec((1, 2 * C), lambda b, t: (0, 0)),
        pl.BlockSpec((P, 2 * C), lambda b, t: (0, 0)),
        pl.BlockSpec((1, 2 * C), lambda b, t: (0, 0)),
    ]
    if merge_out:
        inputs += [w_out, b_out]
        in_specs += [pl.BlockSpec((C, 2 * C), lambda b, t: (0, 0)),
                     pl.BlockSpec((1, 2 * C), lambda b, t: (0, 0))]
    else:
        inputs += [w_out[:, :C], w_out[:, C:], b_out[:, :C], b_out[:, C:]]
        in_specs += [pl.BlockSpec((C, C), lambda b, t: (0, 0)),
                     pl.BlockSpec((C, C), lambda b, t: (0, 0)),
                     pl.BlockSpec((1, C), lambda b, t: (0, 0)),
                     pl.BlockSpec((1, C), lambda b, t: (0, 0))]

    kernel = functools.partial(
        _conv_mul_block_kernel, channels=C, kernel_size=kernel_size,
        dilation=dilation, pad=pad, tile_t=Tt, chunk_len=L, n_chunks_total=K,
        m_chunks=m_chunks, rows_per_chunk=rows_per_chunk,
        im2col=im2col, merge_out=merge_out)

    itemsize = jnp.dtype(x.dtype).itemsize
    w_itemsize = jnp.dtype(params["w_conv"].dtype).itemsize
    flops = B * (2 * T * kernel_size * C * 2 * C        # conv
                 + 2 * K * P * 4 * C                    # cond (two 2C dots)
                 + 2 * T * C * 2 * C                    # out projection
                 + 12 * T * C)                          # elementwise
    transcendentals = B * (K * 2 * C + 2 * T * C)
    bytes_accessed = int(
        (x_pad.size + pose_tc.size + 2 * B * T * C) * itemsize
        + n_t * B * 2 * pad * C * itemsize
        + (w_conv.size + w_cond.size + w_out.size + 8 * C) * w_itemsize)
    cost = pl.CostEstimate(flops=int(flops),
                           transcendentals=int(transcendentals),
                           bytes_accessed=bytes_accessed)

    res_tc, skip_tc = pl.pallas_call(
        kernel,
        grid=(B, n_t),
        in_specs=in_specs,
        out_specs=[pl.BlockSpec((1, Tt, C), lambda b, t: (b, t, 0)),
                   pl.BlockSpec((1, Tt, C), lambda b, t: (b, t, 0))],
        out_shape=[jax.ShapeDtypeStruct((B, T, C), x.dtype),
                   jax.ShapeDtypeStruct((B, T, C), x.dtype)],
        compiler_params=pltpu.CompilerParams(
            dimension_semantics=("parallel", "parallel"),
            vmem_limit_bytes=_vmem_limit_bytes()),
        cost_estimate=cost,
    )(*inputs)

    # back to PyTorch NCL layout
    return jnp.transpose(res_tc, (0, 2, 1)), jnp.transpose(skip_tc, (0, 2, 1))


# ----------------------------------------------------------------------------
# Pure-JAX reference (faithful port of the PyTorch forward), for verification.
# ----------------------------------------------------------------------------
def conv_mul_block_reference(x, pose_dome, params, *, channels, kernel_size=3,
                             dilation=1):
    C = channels
    pad = (dilation * (kernel_size - 1)) // 2
    conv = lambda inp, w, p, d: jax.lax.conv_general_dilated(
        inp, w, window_strides=(1,), padding=[(p, p)], rhs_dilation=(d,),
        dimension_numbers=("NCH", "OIH", "NCH"))
    y = conv(x, params["w_conv"], pad, dilation) + params["b_conv"][None, :, None]
    cond = conv(pose_dome, params["w_cond"], 0, 1) + params["b_cond"][None, :, None]
    mul, add = cond[:, :2 * C, :], cond[:, 2 * C:, :]
    mul = jnp.exp(mul)
    B, Cc, K = add.shape
    y = y.reshape(B, Cc, K, -1) * mul[..., None] + add[..., None]
    y = y.reshape(B, Cc, -1)
    y = jnp.tanh(y[:, :C, :]) * jax.nn.sigmoid(y[:, C:, :])
    o = conv(y, params["w_out"], 0, 1) + params["b_out"][None, :, None]
    res, skip = o[:, :C, :], o[:, C:, :]
    return (res + x) / 2, skip


# ----------------------------------------------------------------------------
if __name__ == "__main__":
    def make_params(key, C, P, k):
        ks = jax.random.split(key, 6)
        s1 = 1.0 / (C * k) ** 0.5
        s2 = 1.0 / P ** 0.5
        s3 = 1.0 / C ** 0.5
        return {
            "w_conv": jax.random.normal(ks[0], (2 * C, C, k), jnp.float32) * s1,
            "b_conv": jax.random.normal(ks[1], (2 * C,), jnp.float32) * s1,
            "w_cond": jax.random.normal(ks[2], (4 * C, P, 1), jnp.float32) * s2,
            "b_cond": jax.random.normal(ks[3], (4 * C,), jnp.float32) * s2,
            "w_out":  jax.random.normal(ks[4], (2 * C, C, 1), jnp.float32) * s3,
            "b_out":  jax.random.normal(ks[5], (2 * C,), jnp.float32) * s3,
        }

    key = jax.random.PRNGKey(0)
    #        B  C  P   T  K  k  dil  time_tile
    cases = [(2, 8, 8, 16, 4, 3, 1, 512),   # single tile, im2col, split out
             (2, 8, 8, 64, 4, 3, 1, 16),    # 4 time tiles, tile within a chunk
             (2, 8, 8, 64, 8, 3, 2, 16),    # 4 time tiles, 2 chunks/tile, dilation 2
             (2, 8, 8, 32, 4, 1, 1, 512)]   # kernel_size=1 (no halo path)

    for (B, C, P, T, K, ksz, dil, tt) in cases:
        key, kp, kx, kq = jax.random.split(key, 4)
        params = make_params(kp, C, P, ksz)
        x = jax.random.normal(kx, (B, C, T), jnp.float32)
        pose_dome = jax.random.normal(kq, (B, P, K), jnp.float32)

        res, skip = conv_mul_block(x, pose_dome, params, channels=C,
                                   kernel_size=ksz, dilation=dil,
                                   causal=False, time_tile=tt)
        jax.block_until_ready((res, skip))

        res_ref, skip_ref = conv_mul_block_reference(
            x, pose_dome, params, channels=C, kernel_size=ksz, dilation=dil)

        assert res.shape == (B, C, T) and skip.shape == (B, C, T)
        assert jnp.allclose(res, res_ref, atol=1e-3, rtol=1e-3)
        assert jnp.allclose(skip, skip_ref, atol=1e-3, rtol=1e-3)

    print("KERNEL_OK")
</pallas_src>

<mosaic_0001>
module attributes {stable_mosaic.version = 11 : i64} {
  func.func @_conv_mul_block_kernel(%arg0: i32, %arg1: i32, %arg2: memref<1x16x8xf32, #tpu.memory_space<vmem>>, %arg3: memref<1x1x2x8xf32, #tpu.memory_space<vmem>>, %arg4: memref<1x4x8xf32, #tpu.memory_space<vmem>>, %arg5: memref<24x16xf32, #tpu.memory_space<vmem>>, %arg6: memref<1x16xf32, #tpu.memory_space<vmem>>, %arg7: memref<8x16xf32, #tpu.memory_space<vmem>>, %arg8: memref<1x16xf32, #tpu.memory_space<vmem>>, %arg9: memref<8x16xf32, #tpu.memory_space<vmem>>, %arg10: memref<1x16xf32, #tpu.memory_space<vmem>>, %arg11: memref<8x8xf32, #tpu.memory_space<vmem>>, %arg12: memref<8x8xf32, #tpu.memory_space<vmem>>, %arg13: memref<1x8xf32, #tpu.memory_space<vmem>>, %arg14: memref<1x8xf32, #tpu.memory_space<vmem>>, %arg15: memref<1x16x8xf32, #tpu.memory_space<vmem>>, %arg16: memref<1x16x8xf32, #tpu.memory_space<vmem>>) attributes {dimension_semantics = [#tpu.dimension_semantics<parallel>, #tpu.dimension_semantics<parallel>], iteration_bounds = array<i64: 2, 1>, scalar_prefetch = 0 : i64, scratch_operands = 0 : i64, tpu.core_type = #tpu.core_type<tc>, window_params = [{transform_indices = @transform_0, window_bounds = array<i64: 1, 16, 8>}, {transform_indices = @transform_1, window_bounds = array<i64: 1, 1, 2, 8>}, {transform_indices = @transform_2, window_bounds = array<i64: 1, 4, 8>}, {pipeline_mode = #tpu.pipeline_mode<synchronous>, transform_indices = @transform_3, window_bounds = array<i64: 24, 16>}, {pipeline_mode = #tpu.pipeline_mode<synchronous>, transform_indices = @transform_4, window_bounds = array<i64: 1, 16>}, {pipeline_mode = #tpu.pipeline_mode<synchronous>, transform_indices = @transform_5, window_bounds = array<i64: 8, 16>}, {pipeline_mode = #tpu.pipeline_mode<synchronous>, transform_indices = @transform_6, window_bounds = array<i64: 1, 16>}, {pipeline_mode = #tpu.pipeline_mode<synchronous>, transform_indices = @transform_7, window_bounds = array<i64: 8, 16>}, {pipeline_mode = #tpu.pipeline_mode<synchronous>, transform_indices = @transform_8, window_bounds = array<i64: 1, 16>}, {pipeline_mode = #tpu.pipeline_mode<synchronous>, transform_indices = @transform_9, window_bounds = array<i64: 8, 8>}, {pipeline_mode = #tpu.pipeline_mode<synchronous>, transform_indices = @transform_10, window_bounds = array<i64: 8, 8>}, {pipeline_mode = #tpu.pipeline_mode<synchronous>, transform_indices = @transform_11, window_bounds = array<i64: 1, 8>}, {pipeline_mode = #tpu.pipeline_mode<synchronous>, transform_indices = @transform_12, window_bounds = array<i64: 1, 8>}, {transform_indices = @transform_13, window_bounds = array<i64: 1, 16, 8>}, {transform_indices = @transform_14, window_bounds = array<i64: 1, 16, 8>}]} {
    %c0 = arith.constant 0 : index
    %c0_0 = arith.constant 0 : index
    %c0_1 = arith.constant 0 : index
    %0 = vector.load %arg2[%c0, %c0_0, %c0_1] : memref<1x16x8xf32, #tpu.memory_space<vmem>>, vector<1x16x8xf32>
    %1 = vector.shape_cast %0 : vector<1x16x8xf32> to vector<16x8xf32>
    %c0_2 = arith.constant 0 : index
    %c0_3 = arith.constant 0 : index
    %c0_4 = arith.constant 0 : index
    %c0_5 = arith.constant 0 : index
    %2 = vector.load %arg3[%c0_2, %c0_3, %c0_4, %c0_5] : memref<1x1x2x8xf32, #tpu.memory_space<vmem>>, vector<1x1x2x8xf32>
    %3 = vector.shape_cast %2 : vector<1x1x2x8xf32> to vector<2x8xf32>
    %4 = tpu.concatenate %1, %3 in 0 : vector<16x8xf32>, vector<2x8xf32> -> vector<18x8xf32>
    %5 = vector.extract_strided_slice %4 {offsets = [0, 0], sizes = [16, 8], strides = [1, 1]} : vector<18x8xf32> to vector<16x8xf32>
    %6 = vector.extract_strided_slice %4 {offsets = [1, 0], sizes = [16, 8], strides = [1, 1]} : vector<18x8xf32> to vector<16x8xf32>
    %7 = vector.extract_strided_slice %4 {offsets = [2, 0], sizes = [16, 8], strides = [1, 1]} : vector<18x8xf32> to vector<16x8xf32>
    %8 = tpu.concatenate %5, %6, %7 in 1 : vector<16x8xf32>, vector<16x8xf32>, vector<16x8xf32> -> vector<16x24xf32>
    %c0_6 = arith.constant 0 : index
    %c0_7 = arith.constant 0 : index
    %9 = vector.load %arg5[%c0_6, %c0_7] : memref<24x16xf32, #tpu.memory_space<vmem>>, vector<24x16xf32>
    %cst = arith.constant dense<0.000000e+00> : vector<16x16xf32>
    %10 = tpu.matmul %8, %9, %cst {dimension_numbers = #tpu.dot_dimension_numbers<[1], [0], [0], [1], [0, 0, 1, 1], [], []>} : vector<16x24xf32>, vector<24x16xf32>, vector<16x16xf32> -> vector<16x16xf32>
    %c0_8 = arith.constant 0 : index
    %c0_9 = arith.constant 0 : index
    %11 = vector.load %arg6[%c0_8, %c0_9] : memref<1x16xf32, #tpu.memory_space<vmem>>, vector<1x16xf32>
    %12 = vector.broadcast %11 : vector<1x16xf32> to vector<16x16xf32>
    %13 = arith.addf %10, %12 : vector<16x16xf32>
    %c0_10 = arith.constant 0 : index
    %c0_11 = arith.constant 0 : index
    %c0_12 = arith.constant 0 : index
    %14 = vector.load %arg4[%c0_10, %c0_11, %c0_12] : memref<1x4x8xf32, #tpu.memory_space<vmem>>, vector<1x4x8xf32>
    %15 = vector.shape_cast %14 : vector<1x4x8xf32> to vector<4x8xf32>
    %c0_13 = arith.constant 0 : index
    %c0_14 = arith.constant 0 : index
    %16 = vector.load %arg7[%c0_13, %c0_14] : memref<8x16xf32, #tpu.memory_space<vmem>>, vector<8x16xf32>
    %cst_15 = arith.constant dense<0.000000e+00> : vector<4x16xf32>
    %17 = tpu.matmul %15, %16, %cst_15 {dimension_numbers = #tpu.dot_dimension_numbers<[1], [0], [0], [1], [0, 0, 1, 1], [], []>} : vector<4x8xf32>, vector<8x16xf32>, vector<4x16xf32> -> vector<4x16xf32>
    %c0_16 = arith.constant 0 : index
    %c0_17 = arith.constant 0 : index
    %18 = vector.load %arg8[%c0_16, %c0_17] : memref<1x16xf32, #tpu.memory_space<vmem>>, vector<1x16xf32>
    %19 = vector.broadcast %18 : vector<1x16xf32> to vector<4x16xf32>
    %20 = arith.addf %17, %19 : vector<4x16xf32>
    %21 = math.exp %20 : vector<4x16xf32>
    %c0_18 = arith.constant 0 : index
    %c0_19 = arith.constant 0 : index
    %22 = vector.load %arg9[%c0_18, %c0_19] : memref<8x16xf32, #tpu.memory_space<vmem>>, vector<8x16xf32>
    %cst_20 = arith.constant dense<0.000000e+00> : vector<4x16xf32>
    %23 = tpu.matmul %15, %22, %cst_20 {dimension_numbers = #tpu.dot_dimension_numbers<[1], [0], [0], [1], [0, 0, 1, 1], [], []>} : vector<4x8xf32>, vector<8x16xf32>, vector<4x16xf32> -> vector<4x16xf32>
    %c0_21 = arith.constant 0 : index
    %c0_22 = arith.constant 0 : index
    %24 = vector.load %arg10[%c0_21, %c0_22] : memref<1x16xf32, #tpu.memory_space<vmem>>, vector<1x16xf32>
    %25 = vector.broadcast %24 : vector<1x16xf32> to vector<4x16xf32>
    %26 = arith.addf %23, %25 : vector<4x16xf32>
    %27 = vector.shape_cast %13 : vector<16x16xf32> to vector<4x4x16xf32>
    %28 = vector.shape_cast %21 : vector<4x16xf32> to vector<4x1x16xf32>
    %29 = vector.broadcast %28 : vector<4x1x16xf32> to vector<4x4x16xf32>
    %30 = arith.mulf %27, %29 : vector<4x4x16xf32>
    %31 = vector.shape_cast %26 : vector<4x16xf32> to vector<4x1x16xf32>
    %32 = vector.broadcast %31 : vector<4x1x16xf32> to vector<4x4x16xf32>
    %33 = arith.addf %30, %32 : vector<4x4x16xf32>
    %34 = vector.shape_cast %33 : vector<4x4x16xf32> to vector<16x16xf32>
    %35 = vector.extract_strided_slice %34 {offsets = [0, 0], sizes = [16, 8], strides = [1, 1]} : vector<16x16xf32> to vector<16x8xf32>
    %36 = math.tanh %35 : vector<16x8xf32>
    %37 = vector.extract_strided_slice %34 {offsets = [0, 8], sizes = [16, 8], strides = [1, 1]} : vector<16x16xf32> to vector<16x8xf32>
    %38 = arith.negf %37 : vector<16x8xf32>
    %39 = math.exp %38 : vector<16x8xf32>
    %cst_23 = arith.constant 1.000000e+00 : f32
    %40 = vector.broadcast %cst_23 : f32 to vector<16x8xf32>
    %41 = arith.addf %40, %39 : vector<16x8xf32>
    %42 = arith.divf %40, %41 : vector<16x8xf32>
    %43 = arith.mulf %36, %42 : vector<16x8xf32>
    %c0_24 = arith.constant 0 : index
    %c0_25 = arith.constant 0 : index
    %44 = vector.load %arg11[%c0_24, %c0_25] : memref<8x8xf32, #tpu.memory_space<vmem>>, vector<8x8xf32>
    %cst_26 = arith.constant dense<0.000000e+00> : vector<16x8xf32>
    %45 = tpu.matmul %43, %44, %cst_26 {dimension_numbers = #tpu.dot_dimension_numbers<[1], [0], [0], [1], [0, 0, 1, 1], [], []>} : vector<16x8xf32>, vector<8x8xf32>, vector<16x8xf32> -> vector<16x8xf32>
    %c0_27 = arith.constant 0 : index
    %c0_28 = arith.constant 0 : index
    %46 = vector.load %arg13[%c0_27, %c0_28] : memref<1x8xf32, #tpu.memory_space<vmem>>, vector<1x8xf32>
    %47 = vector.broadcast %46 : vector<1x8xf32> to vector<16x8xf32>
    %48 = arith.addf %45, %47 : vector<16x8xf32>
    %c0_29 = arith.constant 0 : index
    %c0_30 = arith.constant 0 : index
    %49 = vector.load %arg12[%c0_29, %c0_30] : memref<8x8xf32, #tpu.memory_space<vmem>>, vector<8x8xf32>
    %cst_31 = arith.constant dense<0.000000e+00> : vector<16x8xf32>
    %50 = tpu.matmul %43, %49, %cst_31 {dimension_numbers = #tpu.dot_dimension_numbers<[1], [0], [0], [1], [0, 0, 1, 1], [], []>} : vector<16x8xf32>, vector<8x8xf32>, vector<16x8xf32> -> vector<16x8xf32>
    %c0_32 = arith.constant 0 : index
    %c0_33 = arith.constant 0 : index
    %51 = vector.load %arg14[%c0_32, %c0_33] : memref<1x8xf32, #tpu.memory_space<vmem>>, vector<1x8xf32>
    %52 = vector.broadcast %51 : vector<1x8xf32> to vector<16x8xf32>
    %53 = arith.addf %50, %52 : vector<16x8xf32>
    %54 = arith.addf %48, %6 : vector<16x8xf32>
    %cst_34 = arith.constant 5.000000e-01 : f32
    %55 = vector.broadcast %cst_34 : f32 to vector<16x8xf32>
    %56 = arith.mulf %54, %55 : vector<16x8xf32>
    %c0_35 = arith.constant 0 : index
    %c0_36 = arith.constant 0 : index
    %c0_37 = arith.constant 0 : index
    %57 = vector.load %arg15[%c0_35, %c0_36, %c0_37] : memref<1x16x8xf32, #tpu.memory_space<vmem>>, vector<1x16x8xf32>
    %58 = vector.shape_cast %57 : vector<1x16x8xf32> to vector<16x8xf32>
    %59 = vector.shape_cast %56 : vector<16x8xf32> to vector<1x16x8xf32>
    tpu.vector_store %arg15[%c0_35, %c0_36, %c0_37], %59 {strides = array<i32>} : memref<1x16x8xf32, #tpu.memory_space<vmem>>, vector<1x16x8xf32>,
    %c0_38 = arith.constant 0 : index
    %c0_39 = arith.constant 0 : index
    %c0_40 = arith.constant 0 : index
    %60 = vector.load %arg16[%c0_38, %c0_39, %c0_40] : memref<1x16x8xf32, #tpu.memory_space<vmem>>, vector<1x16x8xf32>
    %61 = vector.shape_cast %60 : vector<1x16x8xf32> to vector<16x8xf32>
    %62 = vector.shape_cast %53 : vector<16x8xf32> to vector<1x16x8xf32>
    tpu.vector_store %arg16[%c0_38, %c0_39, %c0_40], %62 {strides = array<i32>} : memref<1x16x8xf32, #tpu.memory_space<vmem>>, vector<1x16x8xf32>,
    return
  }
  func.func @transform_0(%arg0: i32, %arg1: i32) -> (i32, i32, i32) {
    %c0_i32 = arith.constant 0 : i32
    %c0_i32_0 = arith.constant 0 : i32
    return %arg0, %arg1, %c0_i32 : i32, i32, i32
  }
  func.func @transform_1(%arg0: i32, %arg1: i32) -> (i32, i32, i32, i32) {
    %c0_i32 = arith.constant 0 : i32
    %c0_i32_0 = arith.constant 0 : i32
    %c0_i32_1 = arith.constant 0 : i32
    return %arg0, %arg1, %c0_i32, %c0_i32_0 : i32, i32, i32, i32
  }
  func.func @transform_2(%arg0: i32, %arg1: i32) -> (i32, i32, i32) {
    %c0_i32 = arith.constant 0 : i32
    %c0_i32_0 = arith.constant 0 : i32
    %c0_i32_1 = arith.constant 0 : i32
    return %arg0, %c0_i32, %c0_i32_0 : i32, i32, i32
  }
  func.func @transform_3(%arg0: i32, %arg1: i32) -> (i32, i32) {
    %c0_i32 = arith.constant 0 : i32
    %c0_i32_0 = arith.constant 0 : i32
    %c0_i32_1 = arith.constant 0 : i32
    return %c0_i32, %c0_i32_0 : i32, i32
  }
  func.func @transform_4(%arg0: i32, %arg1: i32) -> (i32, i32) {
    %c0_i32 = arith.constant 0 : i32
    %c0_i32_0 = arith.constant 0 : i32
    %c0_i32_1 = arith.constant 0 : i32
    return %c0_i32, %c0_i32_0 : i32, i32
  }
  func.func @transform_5(%arg0: i32, %arg1: i32) -> (i32, i32) {
    %c0_i32 = arith.constant 0 : i32
    %c0_i32_0 = arith.constant 0 : i32
    %c0_i32_1 = arith.constant 0 : i32
    return %c0_i32, %c0_i32_0 : i32, i32
  }
  func.func @transform_6(%arg0: i32, %arg1: i32) -> (i32, i32) {
    %c0_i32 = arith.constant 0 : i32
    %c0_i32_0 = arith.constant 0 : i32
    %c0_i32_1 = arith.constant 0 : i32
    return %c0_i32, %c0_i32_0 : i32, i32
  }
  func.func @transform_7(%arg0: i32, %arg1: i32) -> (i32, i32) {
    %c0_i32 = arith.constant 0 : i32
    %c0_i32_0 = arith.constant 0 : i32
    %c0_i32_1 = arith.constant 0 : i32
    return %c0_i32, %c0_i32_0 : i32, i32
  }
  func.func @transform_8(%arg0: i32, %arg1: i32) -> (i32, i32) {
    %c0_i32 = arith.constant 0 : i32
    %c0_i32_0 = arith.constant 0 : i32
    %c0_i32_1 = arith.constant 0 : i32
    return %c0_i32, %c0_i32_0 : i32, i32
  }
  func.func @transform_9(%arg0: i32, %arg1: i32) -> (i32, i32) {
    %c0_i32 = arith.constant 0 : i32
    %c0_i32_0 = arith.constant 0 : i32
    %c0_i32_1 = arith.constant 0 : i32
    return %c0_i32, %c0_i32_0 : i32, i32
  }
  func.func @transform_10(%arg0: i32, %arg1: i32) -> (i32, i32) {
    %c0_i32 = arith.constant 0 : i32
    %c0_i32_0 = arith.constant 0 : i32
    %c0_i32_1 = arith.constant 0 : i32
    return %c0_i32, %c0_i32_0 : i32, i32
  }
  func.func @transform_11(%arg0: i32, %arg1: i32) -> (i32, i32) {
    %c0_i32 = arith.constant 0 : i32
    %c0_i32_0 = arith.constant 0 : i32
    %c0_i32_1 = arith.constant 0 : i32
    return %c0_i32, %c0_i32_0 : i32, i32
  }
  func.func @transform_12(%arg0: i32, %arg1: i32) -> (i32, i32) {
    %c0_i32 = arith.constant 0 : i32
    %c0_i32_0 = arith.constant 0 : i32
    %c0_i32_1 = arith.constant 0 : i32
    return %c0_i32, %c0_i32_0 : i32, i32
  }
  func.func @transform_13(%arg0: i32, %arg1: i32) -> (i32, i32, i32) {
    %c0_i32 = arith.constant 0 : i32
    %c0_i32_0 = arith.constant 0 : i32
    return %arg0, %arg1, %c0_i32 : i32, i32, i32
  }
  func.func @transform_14(%arg0: i32, %arg1: i32) -> (i32, i32, i32) {
    %c0_i32 = arith.constant 0 : i32
    %c0_i32_0 = arith.constant 0 : i32
    return %arg0, %arg1, %c0_i32 : i32, i32, i32
  }
}

</mosaic_0001>

<llo_original>
// kernel: tpu_custom_call.1
$region0: #{tpu_custom_call.1}
  #allocation0 [shape = 'u32[]', space=smem, size = 0x4, offset = 0x4, fixed_abs, tag = 'smem constant byte address 0x4 - core index']
  #allocation1 [shape = 'u32[144,128]{1,0:T(1,128)}', space=vmem, size = 0x12000, scoped, tag = 'internal scratch']
  %s0 = inlined_call_operand.vmem [shape: f32[2,16,8], index: 0, kind: input, shape index: {}]
  %s1 = inlined_call_operand.vmem [shape: f32[2,1,2,8], index: 1, kind: input, shape index: {}]
  %s2 = inlined_call_operand.vmem [shape: f32[2,4,8], index: 2, kind: input, shape index: {}]
  %s3 = inlined_call_operand.vmem [shape: f32[24,16], index: 3, kind: input, shape index: {}]
  %s4 = inlined_call_operand.vmem [shape: f32[1,16], index: 4, kind: input, shape index: {}]
  %s5 = inlined_call_operand.vmem [shape: f32[8,16], index: 5, kind: input, shape index: {}]
  %s6 = inlined_call_operand.vmem [shape: f32[1,16], index: 6, kind: input, shape index: {}]
  %s7 = inlined_call_operand.vmem [shape: f32[8,16], index: 7, kind: input, shape index: {}]
  %s8 = inlined_call_operand.vmem [shape: f32[1,16], index: 8, kind: input, shape index: {}]
  %s9 = inlined_call_operand.vmem [shape: f32[8,8], index: 9, kind: input, shape index: {}]
  %s10 = inlined_call_operand.vmem [shape: f32[8,8], index: 10, kind: input, shape index: {}]
  %s11 = inlined_call_operand.vmem [shape: f32[1,8], index: 11, kind: input, shape index: {}]
  %s12 = inlined_call_operand.vmem [shape: f32[1,8], index: 12, kind: input, shape index: {}]
  %s13 = inlined_call_operand.vmem [shape: f32[2,16,8], index: 13, kind: output, shape index: {0}]
  %s14 = inlined_call_operand.vmem [shape: f32[2,16,8], index: 14, kind: output, shape index: {1}]
  %15 = xla_tuple %s13, %s14
  %s16 = sld [smem:[#allocation0]]
  $region93: #{tpu_custom_call.1} parent=0
    _
  %s18 = ssub.s32 1, %s16
  %s19 = scalar_select 0, %s18, %s16
  loop: start=0, step=1, limit=4
  $region2: #{tpu_custom_call.1} parent=0 // loop_pre_header
    _
  $region3: #{tpu_custom_call.1} parent=0 // loop_header
    %s21 = sphi 0, %s25
    %p22 = scmp.ge.s32.totalorder %s21, 4
    %s28 = sphi 0, %s40
    %s29 = sphi 0, %s36
    %s30 = sphi 0, %s28
    %s31 = sphi 0, %s29
    %s32 = sphi 0, %s30
    %s33 = sphi 0, %s31
    %s45 = sphi 0, %s47
    %s48 = sphi 0, %s45
    %s49 = sphi 0, %s48
    %s65 = sphi 0, %s49
    %s73 = sphi 0, %s75
    %s76 = sphi 0, %s73
    %s77 = sphi 0, %s76
    %s93 = sphi 0, %s77
    %s99 = sphi 0, %s101
    %s102 = sphi 0, %s99
    %s103 = sphi 0, %s102
    %s119 = sphi 0, %s103
    %s123 = sphi 0, %s123
    %s125 = sphi 0, %s123
    %s126 = sphi 0, %s125
    %s140 = sphi 0, %s126
    %s144 = sphi 0, %s144
    %s146 = sphi 0, %s144
    %s147 = sphi 0, %s146
    %s161 = sphi 0, %s147
    %s165 = sphi 0, %s165
    %s167 = sphi 0, %s165
    %s168 = sphi 0, %s167
    %s182 = sphi 0, %s168
    %s186 = sphi 0, %s186
    %s188 = sphi 0, %s186
    %s189 = sphi 0, %s188
    %s203 = sphi 0, %s189
    %s207 = sphi 0, %s207
    %s209 = sphi 0, %s207
    %s210 = sphi 0, %s209
    %s224 = sphi 0, %s210
    %s228 = sphi 0, %s228
    %s230 = sphi 0, %s228
    %s231 = sphi 0, %s230
    %s245 = sphi 0, %s231
    %s249 = sphi 0, %s249
    %s251 = sphi 0, %s249
    %s252 = sphi 0, %s251
    %s266 = sphi 0, %s252
    %s270 = sphi 0, %s270
    %s272 = sphi 0, %s270
    %s273 = sphi 0, %s272
    %s287 = sphi 0, %s273
    %s291 = sphi 0, %s291
    %s293 = sphi 0, %s291
    %s294 = sphi 0, %s293
    %s308 = sphi 0, %s294
    %s312 = sphi 0, %s312
    %s314 = sphi 0, %s312
    %s315 = sphi 0, %s314
    %s329 = sphi 0, %s315
    %s337 = sphi 0, %s339
    %s340 = sphi 0, %s337
    %s341 = sphi 0, %s340
    %s357 = sphi 0, %s341
    %s365 = sphi 0, %s367
    %s368 = sphi 0, %s365
    %s369 = sphi 0, %s368
    %s385 = sphi 0, %s369
  $region4: #{tpu_custom_call.1} parent=0 // loop_header_branch
    %24 = sbr.rel (%p22) target = $region8
  $region5: #{tpu_custom_call.1} parent=0 // loop_body
    %s26 = ssub.s32 %s21, 1
    %s27 = ssub.s32 %s21, 2
    %s34 = sadd.s32 1, %s29
    %p35 = scmp.ge.s32.totalorder %s34, 1
    %s36 = scalar_select %p35, 0, %s34
    %s37 = sadd.s32 1, %s28
    %s38 = scalar_select %p35, %s37, %s28
    %p39 = scmp.ge.s32.totalorder %s38, 2
    %s40 = scalar_select %p39, 0, %s38
    %s41 = ssub.s32 %s28, %s40
    %s42 = ssub.s32 %s29, %s36
    %s43 = sor.u32 %s41, %s42
    %p44 = scmp.eq.s32.totalorder %s43, 0
    %s46 = sadd.s32 %s45, 1
    %s47 = scalar_select %p44, %s45, %s46
    %p50 = pneg %p44
    %p51 = scmp.eq.s32.totalorder %s21, 1
    %p52 = por %p50, %p51
    %p53 = scmp.ne.s32.totalorder %s45, %s48
    %p54 = scmp.eq.s32.totalorder %s21, 0
    %p55 = por %p53, %p54
    %p56 = scmp.ne.s32.totalorder %s45, %s48
    %p57 = scmp.eq.s32.totalorder %s26, 1
    %p58 = por %p56, %p57
    %p59 = scmp.ne.s32.totalorder %s48, %s49
    %p60 = scmp.eq.s32.totalorder %s26, 0
    %p61 = por %p59, %p60
    %p62 = scmp.ne.s32.totalorder %s48, %s49
    %p63 = scmp.eq.s32.totalorder %s27, 1
    %p64 = por %p62, %p63
    %p66 = scmp.ne.s32.totalorder %s49, %s65
    %p67 = scmp.eq.s32.totalorder %s27, 0
    %p68 = por %p66, %p67
    %s69 = ssub.s32 %s28, %s40
    %s70 = ssub.s32 %s29, %s36
    %s71 = sor.u32 %s69, %s70
    %p72 = scmp.eq.s32.totalorder %s71, 0
    %s74 = sadd.s32 %s73, 1
    %s75 = scalar_select %p72, %s73, %s74
    %p78 = pneg %p72
    %p79 = scmp.eq.s32.totalorder %s21, 1
    %p80 = por %p78, %p79
    %p81 = scmp.ne.s32.totalorder %s73, %s76
    %p82 = scmp.eq.s32.totalorder %s21, 0
    %p83 = por %p81, %p82
    %p84 = scmp.ne.s32.totalorder %s73, %s76
    %p85 = scmp.eq.s32.totalorder %s26, 1
    %p86 = por %p84, %p85
    %p87 = scmp.ne.s32.totalorder %s76, %s77
    %p88 = scmp.eq.s32.totalorder %s26, 0
    %p89 = por %p87, %p88
    %p90 = scmp.ne.s32.totalorder %s76, %s77
    %p91 = scmp.eq.s32.totalorder %s27, 1
    %p92 = por %p90, %p91
    %p94 = scmp.ne.s32.totalorder %s77, %s93
    %p95 = scmp.eq.s32.totalorder %s27, 0
    %p96 = por %p94, %p95
    %s97 = ssub.s32 %s28, %s40
    %p98 = scmp.eq.s32.totalorder %s97, 0
    %s100 = sadd.s32 %s99, 1
    %s101 = scalar_select %p98, %s99, %s100
    %p104 = pneg %p98
    %p105 = scmp.eq.s32.totalorder %s21, 1
    %p106 = por %p104, %p105
    %p107 = scmp.ne.s32.totalorder %s99, %s102
    %p108 = scmp.eq.s32.totalorder %s21, 0
    %p109 = por %p107, %p108
    %p110 = scmp.ne.s32.totalorder %s99, %s102
    %p111 = scmp.eq.s32.totalorder %s26, 1
    %p112 = por %p110, %p111
    %p113 = scmp.ne.s32.totalorder %s102, %s103
    %p114 = scmp.eq.s32.totalorder %s26, 0
    %p115 = por %p113, %p114
    %p116 = scmp.ne.s32.totalorder %s102, %s103
    %p117 = scmp.eq.s32.totalorder %s27, 1
    %p118 = por %p116, %p117
    %p120 = scmp.ne.s32.totalorder %s103, %s119
    %p121 = scmp.eq.s32.totalorder %s27, 0
    %p122 = por %p120, %p121
    %s124 = sadd.s32 %s123, 1
    %p127 = scmp.eq.s32.totalorder %s21, 1
    %p128 = scmp.ne.s32.totalorder %s123, %s125
    %p129 = scmp.eq.s32.totalorder %s21, 0
    %p130 = por %p128, %p129
    %p131 = scmp.ne.s32.totalorder %s123, %s125
    %p132 = scmp.eq.s32.totalorder %s26, 1
    %p133 = por %p131, %p132
    %p134 = scmp.ne.s32.totalorder %s125, %s126
    %p135 = scmp.eq.s32.totalorder %s26, 0
    %p136 = por %p134, %p135
    %p137 = scmp.ne.s32.totalorder %s125, %s126
    %p138 = scmp.eq.s32.totalorder %s27, 1
    %p139 = por %p137, %p138
    %p141 = scmp.ne.s32.totalorder %s126, %s140
    %p142 = scmp.eq.s32.totalorder %s27, 0
    %p143 = por %p141, %p142
    %s145 = sadd.s32 %s144, 1
    %p148 = scmp.eq.s32.totalorder %s21, 1
    %p149 = scmp.ne.s32.totalorder %s144, %s146
    %p150 = scmp.eq.s32.totalorder %s21, 0
    %p151 = por %p149, %p150
    %p152 = scmp.ne.s32.totalorder %s144, %s146
    %p153 = scmp.eq.s32.totalorder %s26, 1
    %p154 = por %p152, %p153
    %p155 = scmp.ne.s32.totalorder %s146, %s147
    %p156 = scmp.eq.s32.totalorder %s26, 0
    %p157 = por %p155, %p156
    %p158 = scmp.ne.s32.totalorder %s146, %s147
    %p159 = scmp.eq.s32.totalorder %s27, 1
    %p160 = por %p158, %p159
    %p162 = scmp.ne.s32.totalorder %s147, %s161
    %p163 = scmp.eq.s32.totalorder %s27, 0
    %p164 = por %p162, %p163
    %s166 = sadd.s32 %s165, 1
    %p169 = scmp.eq.s32.totalorder %s21, 1
    %p170 = scmp.ne.s32.totalorder %s165, %s167
    %p171 = scmp.eq.s32.totalorder %s21, 0
    %p172 = por %p170, %p171
    %p173 = scmp.ne.s32.totalorder %s165, %s167
    %p174 = scmp.eq.s32.totalorder %s26, 1
    %p175 = por %p173, %p174
    %p176 = scmp.ne.s32.totalorder %s167, %s168
    %p177 = scmp.eq.s32.totalorder %s26, 0
    %p178 = por %p176, %p177
    %p179 = scmp.ne.s32.totalorder %s167, %s168
    %p180 = scmp.eq.s32.totalorder %s27, 1
    %p181 = por %p179, %p180
    %p183 = scmp.ne.s32.totalorder %s168, %s182
    %p184 = scmp.eq.s32.totalorder %s27, 0
    %p185 = por %p183, %p184
    %s187 = sadd.s32 %s186, 1
    %p190 = scmp.eq.s32.totalorder %s21, 1
    %p191 = scmp.ne.s32.totalorder %s186, %s188
    %p192 = scmp.eq.s32.totalorder %s21, 0
    %p193 = por %p191, %p192
    %p194 = scmp.ne.s32.totalorder %s186, %s188
    %p195 = scmp.eq.s32.totalorder %s26, 1
    %p196 = por %p194, %p195
    %p197 = scmp.ne.s32.totalorder %s188, %s189
    %p198 = scmp.eq.s32.totalorder %s26, 0
    %p199 = por %p197, %p198
    %p200 = scmp.ne.s32.totalorder %s188, %s189
    %p201 = scmp.eq.s32.totalorder %s27, 1
    %p202 = por %p200, %p201
    %p204 = scmp.ne.s32.totalorder %s189, %s203
    %p205 = scmp.eq.s32.totalorder %s27, 0
    %p206 = por %p204, %p205
    %s208 = sadd.s32 %s207, 1
    %p211 = scmp.eq.s32.totalorder %s21, 1
    %p212 = scmp.ne.s32.totalorder %s207, %s209
    %p213 = scmp.eq.s32.totalorder %s21, 0
    %p214 = por %p212, %p213
    %p215 = scmp.ne.s32.totalorder %s207, %s209
    %p216 = scmp.eq.s32.totalorder %s26, 1
    %p217 = por %p215, %p216
    %p218 = scmp.ne.s32.totalorder %s209, %s210
    %p219 = scmp.eq.s32.totalorder %s26, 0
    %p220 = por %p218, %p219
    %p221 = scmp.ne.s32.totalorder %s209, %s210
    %p222 = scmp.eq.s32.totalorder %s27, 1
    %p223 = por %p221, %p222
    %p225 = scmp.ne.s32.totalorder %s210, %s224
    %p226 = scmp.eq.s32.totalorder %s27, 0
    %p227 = por %p225, %p226
    %s229 = sadd.s32 %s228, 1
    %p232 = scmp.eq.s32.totalorder %s21, 1
    %p233 = scmp.ne.s32.totalorder %s228, %s230
    %p234 = scmp.eq.s32.totalorder %s21, 0
    %p235 = por %p233, %p234
    %p236 = scmp.ne.s32.totalorder %s228, %s230
    %p237 = scmp.eq.s32.totalorder %s26, 1
    %p238 = por %p236, %p237
    %p239 = scmp.ne.s32.totalorder %s230, %s231
    %p240 = scmp.eq.s32.totalorder %s26, 0
    %p241 = por %p239, %p240
    %p242 = scmp.ne.s32.totalorder %s230, %s231
    %p243 = scmp.eq.s32.totalorder %s27, 1
    %p244 = por %p242, %p243
    %p246 = scmp.ne.s32.totalorder %s231, %s245
    %p247 = scmp.eq.s32.totalorder %s27, 0
    %p248 = por %p246, %p247
    %s250 = sadd.s32 %s249, 1
    %p253 = scmp.eq.s32.totalorder %s21, 1
    %p254 = scmp.ne.s32.totalorder %s249, %s251
    %p255 = scmp.eq.s32.totalorder %s21, 0
    %p256 = por %p254, %p255
    %p257 = scmp.ne.s32.totalorder %s249, %s251
    %p258 = scmp.eq.s32.totalorder %s26, 1
    %p259 = por %p257, %p258
    %p260 = scmp.ne.s32.totalorder %s251, %s252
    %p261 = scmp.eq.s32.totalorder %s26, 0
    %p262 = por %p260, %p261
    %p263 = scmp.ne.s32.totalorder %s251, %s252
    %p264 = scmp.eq.s32.totalorder %s27, 1
    %p265 = por %p263, %p264
    %p267 = scmp.ne.s32.totalorder %s252, %s266
    %p268 = scmp.eq.s32.totalorder %s27, 0
    %p269 = por %p267, %p268
    %s271 = sadd.s32 %s270, 1
    %p274 = scmp.eq.s32.totalorder %s21, 1
    %p275 = scmp.ne.s32.totalorder %s270, %s272
    %p276 = scmp.eq.s32.totalorder %s21, 0
    %p277 = por %p275, %p276
    %p278 = scmp.ne.s32.totalorder %s270, %s272
    %p279 = scmp.eq.s32.totalorder %s26, 1
    %p280 = por %p278, %p279
    %p281 = scmp.ne.s32.totalorder %s272, %s273
    %p282 = scmp.eq.s32.totalorder %s26, 0
    %p283 = por %p281, %p282
    %p284 = scmp.ne.s32.totalorder %s272, %s273
    %p285 = scmp.eq.s32.totalorder %s27, 1
    %p286 = por %p284, %p285
    %p288 = scmp.ne.s32.totalorder %s273, %s287
    %p289 = scmp.eq.s32.totalorder %s27, 0
    %p290 = por %p288, %p289
    %s292 = sadd.s32 %s291, 1
    %p295 = scmp.eq.s32.totalorder %s21, 1
    %p296 = scmp.ne.s32.totalorder %s291, %s293
    %p297 = scmp.eq.s32.totalorder %s21, 0
    %p298 = por %p296, %p297
    %p299 = scmp.ne.s32.totalorder %s291, %s293
    %p300 = scmp.eq.s32.totalorder %s26, 1
    %p301 = por %p299, %p300
    %p302 = scmp.ne.s32.totalorder %s293, %s294
    %p303 = scmp.eq.s32.totalorder %s26, 0
    %p304 = por %p302, %p303
    %p305 = scmp.ne.s32.totalorder %s293, %s294
    %p306 = scmp.eq.s32.totalorder %s27, 1
    %p307 = por %p305, %p306
    %p309 = scmp.ne.s32.totalorder %s294, %s308
    %p310 = scmp.eq.s32.totalorder %s27, 0
    %p311 = por %p309, %p310
    %s313 = sadd.s32 %s312, 1
    %p316 = scmp.eq.s32.totalorder %s21, 1
    %p317 = scmp.ne.s32.totalorder %s312, %s314
    %p318 = scmp.eq.s32.totalorder %s21, 0
    %p319 = por %p317, %p318
    %p320 = scmp.ne.s32.totalorder %s312, %s314
    %p321 = scmp.eq.s32.totalorder %s26, 1
    %p322 = por %p320, %p321
    %p323 = scmp.ne.s32.totalorder %s314, %s315
    %p324 = scmp.eq.s32.totalorder %s26, 0
    %p325 = por %p323, %p324
    %p326 = scmp.ne.s32.totalorder %s314, %s315
    %p327 = scmp.eq.s32.totalorder %s27, 1
    %p328 = por %p326, %p327
    %p330 = scmp.ne.s32.totalorder %s315, %s329
    %p331 = scmp.eq.s32.totalorder %s27, 0
    %p332 = por %p330, %p331
    %s333 = ssub.s32 %s28, %s40
    %s334 = ssub.s32 %s29, %s36
    %s335 = sor.u32 %s333, %s334
    %p336 = scmp.eq.s32.totalorder %s335, 0
    %s338 = sadd.s32 %s337, 1
    %s339 = scalar_select %p336, %s337, %s338
    %p342 = pneg %p336
    %p343 = scmp.eq.s32.totalorder %s21, 1
    %p344 = por %p342, %p343
    %p345 = scmp.ne.s32.totalorder %s337, %s340
    %p346 = scmp.eq.s32.totalorder %s21, 0
    %p347 = por %p345, %p346
    %p348 = scmp.ne.s32.totalorder %s337, %s340
    %p349 = scmp.eq.s32.totalorder %s26, 1
    %p350 = por %p348, %p349
    %p351 = scmp.ne.s32.totalorder %s340, %s341
    %p352 = scmp.eq.s32.totalorder %s26, 0
    %p353 = por %p351, %p352
    %p354 = scmp.ne.s32.totalorder %s340, %s341
    %p355 = scmp.eq.s32.totalorder %s27, 1
    %p356 = por %p354, %p355
    %p358 = scmp.ne.s32.totalorder %s341, %s357
    %p359 = scmp.eq.s32.totalorder %s27, 0
    %p360 = por %p358, %p359
    %s361 = ssub.s32 %s28, %s40
    %s362 = ssub.s32 %s29, %s36
    %s363 = sor.u32 %s361, %s362
    %p364 = scmp.eq.s32.totalorder %s363, 0
    %s366 = sadd.s32 %s365, 1
    %s367 = scalar_select %p364, %s365, %s366
    %p370 = pneg %p364
    %p371 = scmp.eq.s32.totalorder %s21, 1
    %p372 = por %p370, %p371
    %p373 = scmp.ne.s32.totalorder %s365, %s368
    %p374 = scmp.eq.s32.totalorder %s21, 0
    %p375 = por %p373, %p374
    %p376 = scmp.ne.s32.totalorder %s365, %s368
    %p377 = scmp.eq.s32.totalorder %s26, 1
    %p378 = por %p376, %p377
    %p379 = scmp.ne.s32.totalorder %s368, %s369
    %p380 = scmp.eq.s32.totalorder %s26, 0
    %p381 = por %p379, %p380
    %p382 = scmp.ne.s32.totalorder %s368, %s369
    %p383 = scmp.eq.s32.totalorder %s27, 1
    %p384 = por %p382, %p383
    %p386 = scmp.ne.s32.totalorder %s369, %s385
    %p387 = scmp.eq.s32.totalorder %s27, 0
    %p388 = por %p386, %p387
    %p389 = scmp.le.s32.totalorder 1, %s21
    %p390 = scmp.lt.s32.totalorder %s21, 3
    %p391 = pnand %p389, %p390
    %p392 = pneg %p391
    // Predicated region
    $region9: #{tpu_custom_call.1} parent=5 // pred_check
      _
    $region10: #{tpu_custom_call.1} parent=5 // pred_check_branch
      %394 = sbr.rel (%p391) target = $region12
    $region11: #{tpu_custom_call.1} parent=5 // pred_region
      %s395 = ssub.s32 %s21, 1
      // Predicated region
      $region13: #{tpu_custom_call.1} parent=11 // pred_check
        %p396 = pneg %p136
      $region14: #{tpu_custom_call.1} parent=11 // pred_check_branch
        %398 = sbr.rel (%p396) target = $region16
      $region15: #{tpu_custom_call.1} parent=11 // pred_region
        _
      $region16: #{tpu_custom_call.1} parent=11 // pred_fallthru
        _
      // Predicated region
      $region17: #{tpu_custom_call.1} parent=11 // pred_check
        %p399 = pneg %p157
      $region18: #{tpu_custom_call.1} parent=11 // pred_check_branch
        %401 = sbr.rel (%p399) target = $region20
      $region19: #{tpu_custom_call.1} parent=11 // pred_region
        _
      $region20: #{tpu_custom_call.1} parent=11 // pred_fallthru
        _
      // Predicated region
      $region21: #{tpu_custom_call.1} parent=11 // pred_check
        %p402 = pneg %p178
      $region22: #{tpu_custom_call.1} parent=11 // pred_check_branch
        %404 = sbr.rel (%p402) target = $region24
      $region23: #{tpu_custom_call.1} parent=11 // pred_region
        _
      $region24: #{tpu_custom_call.1} parent=11 // pred_fallthru
        _
      // Predicated region
      $region25: #{tpu_custom_call.1} parent=11 // pred_check
        %p405 = pneg %p199
      $region26: #{tpu_custom_call.1} parent=11 // pred_check_branch
        %407 = sbr.rel (%p405) target = $region28
      $region27: #{tpu_custom_call.1} parent=11 // pred_region
        _
      $region28: #{tpu_custom_call.1} parent=11 // pred_fallthru
        _
      // Predicated region
      $region29: #{tpu_custom_call.1} parent=11 // pred_check
        %p408 = pneg %p220
      $region30: #{tpu_custom_call.1} parent=11 // pred_check_branch
        %410 = sbr.rel (%p408) target = $region32
      $region31: #{tpu_custom_call.1} parent=11 // pred_region
        _
      $region32: #{tpu_custom_call.1} parent=11 // pred_fallthru
        _
      // Predicated region
      $region33: #{tpu_custom_call.1} parent=11 // pred_check
        %p411 = pneg %p241
      $region34: #{tpu_custom_call.1} parent=11 // pred_check_branch
        %413 = sbr.rel (%p411) target = $region36
      $region35: #{tpu_custom_call.1} parent=11 // pred_region
        _
      $region36: #{tpu_custom_call.1} parent=11 // pred_fallthru
        _
      // Predicated region
      $region37: #{tpu_custom_call.1} parent=11 // pred_check
        %p414 = pneg %p262
      $region38: #{tpu_custom_call.1} parent=11 // pred_check_branch
        %416 = sbr.rel (%p414) target = $region40
      $region39: #{tpu_custom_call.1} parent=11 // pred_region
        _
      $region40: #{tpu_custom_call.1} parent=11 // pred_fallthru
        _
      // Predicated region
      $region41: #{tpu_custom_call.1} parent=11 // pred_check
        %p417 = pneg %p283
      $region42: #{tpu_custom_call.1} parent=11 // pred_check_branch
        %419 = sbr.rel (%p417) target = $region44
      $region43: #{tpu_custom_call.1} parent=11 // pred_region
        _
      $region44: #{tpu_custom_call.1} parent=11 // pred_fallthru
        _
      // Predicated region
      $region45: #{tpu_custom_call.1} parent=11 // pred_check
        %p420 = pneg %p304
      $region46: #{tpu_custom_call.1} parent=11 // pred_check_branch
        %422 = sbr.rel (%p420) target = $region48
      $region47: #{tpu_custom_call.1} parent=11 // pred_region
        _
      $region48: #{tpu_custom_call.1} parent=11 // pred_fallthru
        _
      // Predicated region
      $region49: #{tpu_custom_call.1} parent=11 // pred_check
        %p423 = pneg %p325
      $region50: #{tpu_custom_call.1} parent=11 // pred_check_branch
        %425 = sbr.rel (%p423) target = $region52
      $region51: #{tpu_custom_call.1} parent=11 // pred_region
        _
      $region52: #{tpu_custom_call.1} parent=11 // pred_fallthru
        _
    $region12: #{tpu_custom_call.1} parent=5 // pred_fallthru
      _
    %p426 = scmp.lt.s32.totalorder %s21, 2
    // Predicated region
    $region53: #{tpu_custom_call.1} parent=5 // pred_check
      %p427 = pneg %p426
    $region54: #{tpu_custom_call.1} parent=5 // pred_check_branch
      %429 = sbr.rel (%p427) target = $region56
    $region55: #{tpu_custom_call.1} parent=5 // pred_region
      // Predicated region
      $region57: #{tpu_custom_call.1} parent=55 // pred_check
        %p430 = pneg %p55
      $region58: #{tpu_custom_call.1} parent=55 // pred_check_branch
        %432 = sbr.rel (%p430) target = $region60
      $region59: #{tpu_custom_call.1} parent=55 // pred_region
        %s433 = smul.u32 2, %s29
        %p434 = scmp.lt.s32.totalorder %s28, 1
        %s435 = scalar_select %p434, %s28, 1
        %p436 = scmp.lt.s32.totalorder %s433, 1
        %s437 = scalar_select %p436, %s433, 1
        %s438 = smul.addr %s435, 2
        %s439 = sadd.s32 %s437, %s438
        %s440 = smul.addr %s439, 8
        %s441 = scalar_lea.vmem %s0, %s440
        %s442 = smul.u32 2, %s29
      $region60: #{tpu_custom_call.1} parent=55 // pred_fallthru
        _
      // Predicated region
      $region61: #{tpu_custom_call.1} parent=55 // pred_check
        %p443 = pneg %p83
      $region62: #{tpu_custom_call.1} parent=55 // pred_check_branch
        %445 = sbr.rel (%p443) target = $region64
      $region63: #{tpu_custom_call.1} parent=55 // pred_region
        %p446 = scmp.lt.s32.totalorder %s28, 1
        %s447 = scalar_select %p446, %s28, 1
        %p448 = scmp.lt.s32.totalorder %s29, 0
        %s449 = scalar_select %p448, %s29, 0
        %s450 = sadd.s32 %s449, %s447
        %s451 = smul.addr %s450, 2
        %s452 = scalar_lea.vmem %s1, %s451
      $region64: #{tpu_custom_call.1} parent=55 // pred_fallthru
        _
      // Predicated region
      $region65: #{tpu_custom_call.1} parent=55 // pred_check
        %p453 = pneg %p109
      $region66: #{tpu_custom_call.1} parent=55 // pred_check_branch
        %455 = sbr.rel (%p453) target = $region68
      $region67: #{tpu_custom_call.1} parent=55 // pred_region
        %p456 = scmp.lt.s32.totalorder %s28, 1
        %s457 = scalar_select %p456, %s28, 1
        %s458 = smul.addr %s457, 4
        %s459 = scalar_lea.vmem %s2, %s458
      $region68: #{tpu_custom_call.1} parent=55 // pred_fallthru
        _
    $region56: #{tpu_custom_call.1} parent=5 // pred_fallthru
      _
    %p460 = scmp.le.s32.totalorder 1, %s21
    %p461 = scmp.lt.s32.totalorder %s21, 3
    %p462 = pnand %p460, %p461
    %p463 = pneg %p462
    // Predicated region
    $region69: #{tpu_custom_call.1} parent=5 // pred_check
      _
    $region70: #{tpu_custom_call.1} parent=5 // pred_check_branch
      %465 = sbr.rel (%p462) target = $region72
    $region71: #{tpu_custom_call.1} parent=5 // pred_region
      %s466 = ssub.s32 %s21, 1
      %s467 = smul.u32 2, %s31
      %p468 = scmp.lt.s32.totalorder %s30, 1
      %s469 = scalar_select %p468, %s30, 1
      %p470 = scmp.lt.s32.totalorder %s467, 1
      %s471 = scalar_select %p470, %s467, 1
      %s472 = smul.addr %s469, 2
      %s473 = sadd.s32 %s471, %s472
      %s474 = smul.addr %s473, 8
      %s475 = scalar_lea.vmem %s0, %s474
      %p476 = pneg %p61
      %p477 = pneg %p58
      %p478 = scmp.lt.s32.totalorder %s30, 1
      %s479 = scalar_select %p478, %s30, 1
      %p480 = scmp.lt.s32.totalorder %s31, 0
      %s481 = scalar_select %p480, %s31, 0
      %s482 = sadd.s32 %s481, %s479
      %s483 = smul.addr %s482, 2
      %s484 = scalar_lea.vmem %s1, %s483
      %p485 = pneg %p89
      %p486 = pneg %p86
      %p487 = scmp.lt.s32.totalorder %s30, 1
      %s488 = scalar_select %p487, %s30, 1
      %s489 = smul.addr %s488, 4
      %s490 = scalar_lea.vmem %s2, %s489
      %p491 = pneg %p115
      %p492 = pneg %p112
      %p493 = pneg %p136
      %p494 = pneg %p133
      %p495 = pneg %p157
      %p496 = pneg %p154
      %p497 = pneg %p178
      %p498 = pneg %p175
      %p499 = pneg %p199
      %p500 = pneg %p196
      %p501 = pneg %p220
      %p502 = pneg %p217
      %p503 = pneg %p241
      %p504 = pneg %p238
      %p505 = pneg %p262
      %p506 = pneg %p259
      %p507 = pneg %p283
      %p508 = pneg %p280
      %p509 = pneg %p304
      %p510 = pneg %p301
      %p511 = pneg %p325
      %p512 = pneg %p322
      %p513 = pneg %p353
      %p514 = pneg %p350
      %s515 = smul.u32 2, %s31
      %p516 = scmp.lt.s32.totalorder %s30, 1
      %s517 = scalar_select %p516, %s30, 1
      %p518 = scmp.lt.s32.totalorder %s515, 1
      %s519 = scalar_select %p518, %s515, 1
      %s520 = smul.addr %s517, 2
      %s521 = sadd.s32 %s519, %s520
      %s522 = smul.addr %s521, 8
      %s523 = scalar_lea.vmem %s13, %s522
      %p524 = pneg %p381
      %p525 = pneg %p378
      %s526 = smul.u32 2, %s31
      %p527 = scmp.lt.s32.totalorder %s30, 1
      %s528 = scalar_select %p527, %s30, 1
      %p529 = scmp.lt.s32.totalorder %s526, 1
      %s530 = scalar_select %p529, %s526, 1
      %s531 = smul.addr %s528, 2
      %s532 = sadd.s32 %s530, %s531
      %s533 = smul.addr %s532, 8
      %s534 = scalar_lea.vmem %s14, %s533
      %s535 = smul.u32 2, %s31
      %p536 = scmp.lt.s32.totalorder %s30, 1
      %s537 = scalar_select %p536, %s30, 1
      %p538 = scmp.lt.s32.totalorder %s535, 1
      %s539 = scalar_select %p538, %s535, 1
      %s540 = smul.addr %s537, 2
      %s541 = sadd.s32 %s539, %s540
      %s542 = smul.addr %s541, 8
      %s543 = scalar_lea.vmem %s0, %s542
      %s544 = smul.u32 2, %s31
      %p545 = scmp.lt.s32.totalorder %s30, 1
      %s546 = scalar_select %p545, %s30, 1
      %p547 = scmp.lt.s32.totalorder %s31, 0
      %s548 = scalar_select %p547, %s31, 0
      %s549 = sadd.s32 %s548, %s546
      %s550 = smul.addr %s549, 2
      %s551 = scalar_lea.vmem %s1, %s550
      %p552 = scmp.lt.s32.totalorder %s30, 1
      %s553 = scalar_select %p552, %s30, 1
      %s554 = smul.addr %s553, 4
      %s555 = scalar_lea.vmem %s2, %s554
      %s556 = smul.u32 2, %s31
      %p557 = scmp.lt.s32.totalorder %s30, 1
      %s558 = scalar_select %p557, %s30, 1
      %p559 = scmp.lt.s32.totalorder %s556, 1
      %s560 = scalar_select %p559, %s556, 1
      %s561 = smul.addr %s558, 2
      %s562 = sadd.s32 %s560, %s561
      %s563 = smul.addr %s562, 8
      %s564 = scalar_lea.vmem %s13, %s563
      %s565 = smul.u32 2, %s31
      %s566 = smul.u32 2, %s31
      %p567 = scmp.lt.s32.totalorder %s30, 1
      %s568 = scalar_select %p567, %s30, 1
      %p569 = scmp.lt.s32.totalorder %s566, 1
      %s570 = scalar_select %p569, %s566, 1
      %s571 = smul.addr %s568, 2
      %s572 = sadd.s32 %s570, %s571
      %s573 = smul.addr %s572, 8
      %s574 = scalar_lea.vmem %s14, %s573
      %s575 = smul.u32 2, %s31
      %v576 = vld [vmem:[%s543] sm:$0xff]
      %v577 = vld [vmem:[%s543 + $0x8] sm:$0xff]
      %v578 = vld [vmem:[%s551] sm:$0x3]
      %vm582 = vcmask 1046528
      %v583 = vrot.slane %v576, 1
      %v584 = vrot.slane %v577, 1
      %v585 = vsel %vm582, %v583, %v584
      %v586 = vrot.slane %v578, 1
      %v587 = vsel %vm582, %v584, %v586
      %588 = vrot.lane.b32.xlu0 %v585, 8
      %v589 = vpop.permute.xlu0 %588
      %590 = vrot.lane.b32.xlu0 %v587, 8
      %v591 = vpop.permute.xlu0 %590
      %vm594 = vcmask 1045504
      %v595 = vrot.slane %v576, 2
      %v596 = vrot.slane %v577, 2
      %v597 = vsel %vm594, %v595, %v596
      %v598 = vrot.slane %v578, 2
      %v599 = vsel %vm594, %v596, %v598
      %600 = vrot.lane.b32.xlu0 %v597, 16
      %v601 = vpop.permute.xlu0 %600
      %602 = vrot.lane.b32.xlu0 %v599, 16
      %v603 = vpop.permute.xlu0 %602
      %vm606 = vcmask 64512
      %v607 = vsel %vm606, %v576, %v589
      %v608 = vsel %vm606, %v577, %v591
      %vm609 = vcmask 130048
      %v610 = vsel %vm609, %v607, %v601
      %v611 = vsel %vm609, %v608, %v603
      %v612 = vld [vmem:[%s3] sm:$0xff]
      %v613 = vld [vmem:[%s3 + $0x8] sm:$0xff]
      %v614 = vld [vmem:[%s3 + $0x10] sm:$0xff]
      %v615 = vld [vmem:[%s4] sm:$0x1]
      %v617 = vlaneseq
      %v618 = vshrl.u32 %v617, 7
      %v619 = vsub.s32 0, %v618
      %v620 = vrot.slane %v615, %v619
      %vm622 = vcmask 195584
      %v624 = vsel %vm622, %v610, 0
      %v627 = vsel %vm622, %v611, 0
      %629 = vmatprep.subr.mxu0 0.0
      %630 = vmatpush1.msra.mxu0 %v612
      %631 = vmatprep.subr.mxu0 0.0
      %632 = vmatpush1.msra.mxu0 %v613
      %633 = vmatprep.subr.mxu0 0.0
      %634 = vmatpush1.msra.mxu0 %v614
      %635 = vmatprep.subr.mxu0 0.0
      %636 = vmatpush1.msra.mxu0 0.0
      %637 = vmatprep.subr.mxu0 0.0
      %638 = vmatpush1.msra.mxu0 0.0
      %639 = vmatprep.subr.mxu0 0.0
      %640 = vmatpush1.msra.mxu0 0.0
      %641 = vmatprep.subr.mxu0 0.0
      %642 = vmatpush1.msra.mxu0 0.0
      %643 = vmatprep.subr.mxu0 0.0
      %644 = vmatpush1.msra.mxu0 0.0
      %645 = vmatprep.subr.mxu0 0.0
      %646 = vmatpush1.msra.mxu0 0.0
      %647 = vmatprep.subr.mxu0 0.0
      %648 = vmatpush1.msra.mxu0 0.0
      %649 = vmatprep.subr.mxu0 0.0
      %650 = vmatpush1.msra.mxu0 0.0
      %651 = vmatprep.subr.mxu0 0.0
      %652 = vmatpush1.msra.mxu0 0.0
      %653 = vmatprep.subr.mxu0 0.0
      %654 = vmatpush1.msra.mxu0 0.0
      %655 = vmatprep.subr.mxu0 0.0
      %656 = vmatpush1.msra.mxu0 0.0
      %657 = vmatprep.subr.mxu0 0.0
      %658 = vmatpush1.msra.mxu0 0.0
      %659 = vmatprep.subr.mxu0 0.0
      %660 = vmatpush1.msra.mxu0 0.0
      %661 = vmatprep.subr.mxu0 0.0
      %662 = vmatpush1.msra.mxu0 0.0
      %663 = vmatprep.subr.mxu0 0.0
      %664 = vmatpush1.msra.mxu0 0.0
      %665 = vmatprep.subr.mxu0 0.0
      %666 = vmatpush1.msra.mxu0 0.0
      %667 = vmatprep.subr.mxu0 0.0
      %668 = vmatpush1.msra.mxu0 0.0
      %669 = vmatprep.subr.mxu0 0.0
      %670 = vmatpush1.msra.mxu0 0.0
      %671 = vmatprep.subr.mxu0 0.0
      %672 = vmatpush1.msra.mxu0 0.0
      %673 = vmatprep.subr.mxu0 0.0
      %674 = vmatpush1.msra.mxu0 0.0
      %675 = vmatprep.subr.mxu0 0.0
      %676 = vmatpush1.msra.mxu0 0.0
      %677 = vmatprep.subr.mxu0 0.0
      %678 = vmatpush1.msra.mxu0 0.0
      %679 = vmatprep.subr.mxu0 0.0
      %680 = vmatpush1.msra.mxu0 0.0
      %681 = vmatprep.subr.mxu0 0.0
      %682 = vmatpush1.msra.mxu0 0.0
      %683 = vmatprep.subr.mxu0 0.0
      %684 = vmatpush1.msra.mxu0 0.0
      %685 = vmatprep.subr.mxu0 0.0
      %686 = vmatpush1.msra.mxu0 0.0
      %687 = vmatprep.subr.mxu0 0.0
      %688 = vmatpush1.msra.mxu0 0.0
      %689 = vmatprep.subr.mxu0 0.0
      %690 = vmatpush1.msra.mxu0 0.0
      %691 = vmatprep.subr.mxu0 0.0
      %692 = vmatpush1.msra.mxu0 0.0
      %693 = vmatprep.mubr.f32.mxu0 0.0
      %694 = vmatmul.mubr.f32.gmra.mrb[0].mxu0 %v624
      %v695 = vpop.f32.mrb[0].mxu0
      %v696 = vadd.f32 %v620, %v695
      %v697 = vpop.f32.mrb[0].mxu0
      %698 = vmatprep.mubr.f32.mxu0 0.0
      %699 = vmatmul.mubr.f32.gmra.mrb[0].mxu0 %v627
      %v700 = vpop.f32.mrb[0].mxu0
      %v701 = vadd.f32 %v620, %v700
      %v702 = vpop.f32.mrb[0].mxu0
      %703 = vdwg.mxu0
      %v704 = vld [vmem:[%s555] sm:$0xf]
      %v705 = vld [vmem:[%s5] sm:$0xff]
      %v706 = vld [vmem:[%s6] sm:$0x1]
      %v708 = vlaneseq
      %v709 = vshrl.u32 %v708, 7
      %v710 = vsub.s32 0, %v709
      %v711 = vrot.slane %v706, %v710
      %v714 = vsel %vm606, %v704, 0
      %716 = vmatprep.subr.mxu0 0.0
      %717 = vmatpush1.msra.mxu0 %v705
      %718 = vmatprep.subr.mxu0 0.0
      %719 = vmatpush1.msra.mxu0 0.0
      %720 = vmatprep.subr.mxu0 0.0
      %721 = vmatpush1.msra.mxu0 0.0
      %722 = vmatprep.subr.mxu0 0.0
      %723 = vmatpush1.msra.mxu0 0.0
      %724 = vmatprep.subr.mxu0 0.0
      %725 = vmatpush1.msra.mxu0 0.0
      %726 = vmatprep.subr.mxu0 0.0
      %727 = vmatpush1.msra.mxu0 0.0
      %728 = vmatprep.subr.mxu0 0.0
      %729 = vmatpush1.msra.mxu0 0.0
      %730 = vmatprep.subr.mxu0 0.0
      %731 = vmatpush1.msra.mxu0 0.0
      %732 = vmatprep.subr.mxu0 0.0
      %733 = vmatpush1.msra.mxu0 0.0
      %734 = vmatprep.subr.mxu0 0.0
      %735 = vmatpush1.msra.mxu0 0.0
      %736 = vmatprep.subr.mxu0 0.0
      %737 = vmatpush1.msra.mxu0 0.0
      %738 = vmatprep.subr.mxu0 0.0
      %739 = vmatpush1.msra.mxu0 0.0
      %740 = vmatprep.subr.mxu0 0.0
      %741 = vmatpush1.msra.mxu0 0.0
      %742 = vmatprep.subr.mxu0 0.0
      %743 = vmatpush1.msra.mxu0 0.0
      %744 = vmatprep.subr.mxu0 0.0
      %745 = vmatpush1.msra.mxu0 0.0
      %746 = vmatprep.subr.mxu0 0.0
      %747 = vmatpush1.msra.mxu0 0.0
      %748 = vmatprep.subr.mxu0 0.0
      %749 = vmatpush1.msra.mxu0 0.0
      %750 = vmatprep.subr.mxu0 0.0
      %751 = vmatpush1.msra.mxu0 0.0
      %752 = vmatprep.subr.mxu0 0.0
      %753 = vmatpush1.msra.mxu0 0.0
      %754 = vmatprep.subr.mxu0 0.0
      %755 = vmatpush1.msra.mxu0 0.0
      %756 = vmatprep.subr.mxu0 0.0
      %757 = vmatpush1.msra.mxu0 0.0
      %758 = vmatprep.subr.mxu0 0.0
      %759 = vmatpush1.msra.mxu0 0.0
      %760 = vmatprep.subr.mxu0 0.0
      %761 = vmatpush1.msra.mxu0 0.0
      %762 = vmatprep.subr.mxu0 0.0
      %763 = vmatpush1.msra.mxu0 0.0
      %764 = vmatprep.subr.mxu0 0.0
      %765 = vmatpush1.msra.mxu0 0.0
      %766 = vmatprep.subr.mxu0 0.0
      %767 = vmatpush1.msra.mxu0 0.0
      %768 = vmatprep.subr.mxu0 0.0
      %769 = vmatpush1.msra.mxu0 0.0
      %770 = vmatprep.subr.mxu0 0.0
      %771 = vmatpush1.msra.mxu0 0.0
      %772 = vmatprep.subr.mxu0 0.0
      %773 = vmatpush1.msra.mxu0 0.0
      %774 = vmatprep.subr.mxu0 0.0
      %775 = vmatpush1.msra.mxu0 0.0
      %776 = vmatprep.subr.mxu0 0.0
      %777 = vmatpush1.msra.mxu0 0.0
      %778 = vmatprep.subr.mxu0 0.0
      %779 = vmatpush1.msra.mxu0 0.0
      %780 = vmatprep.mubr.f32.mxu0 0.0
      %781 = vmatmul.mubr.f32.gmra.mrb[0].mxu0 %v714
      %v782 = vpop.f32.mrb[0].mxu0
      %v783 = vadd.f32 %v711, %v782
      %v784 = vpop.f32.mrb[0].mxu0
      %785 = vdwg.mxu0
      %v786 = vmul.f32 %v783, 1.442695
      %v787 = vpow.pop %v786
      %v788 = vld [vmem:[%s7] sm:$0xff]
      %v789 = vld [vmem:[%s8] sm:$0x1]
      %v791 = vlaneseq
      %v792 = vshrl.u32 %v791, 7
      %v793 = vsub.s32 0, %v792
      %v794 = vrot.slane %v789, %v793
      %796 = vmatprep.subr.mxu0 0.0
      %797 = vmatpush1.msra.mxu0 %v788
      %798 = vmatprep.subr.mxu0 0.0
      %799 = vmatpush1.msra.mxu0 0.0
      %800 = vmatprep.subr.mxu0 0.0
      %801 = vmatpush1.msra.mxu0 0.0
      %802 = vmatprep.subr.mxu0 0.0
      %803 = vmatpush1.msra.mxu0 0.0
      %804 = vmatprep.subr.mxu0 0.0
      %805 = vmatpush1.msra.mxu0 0.0
      %806 = vmatprep.subr.mxu0 0.0
      %807 = vmatpush1.msra.mxu0 0.0
      %808 = vmatprep.subr.mxu0 0.0
      %809 = vmatpush1.msra.mxu0 0.0
      %810 = vmatprep.subr.mxu0 0.0
      %811 = vmatpush1.msra.mxu0 0.0
      %812 = vmatprep.subr.mxu0 0.0
      %813 = vmatpush1.msra.mxu0 0.0
      %814 = vmatprep.subr.mxu0 0.0
      %815 = vmatpush1.msra.mxu0 0.0
      %816 = vmatprep.subr.mxu0 0.0
      %817 = vmatpush1.msra.mxu0 0.0
      %818 = vmatprep.subr.mxu0 0.0
      %819 = vmatpush1.msra.mxu0 0.0
      %820 = vmatprep.subr.mxu0 0.0
      %821 = vmatpush1.msra.mxu0 0.0
      %822 = vmatprep.subr.mxu0 0.0
      %823 = vmatpush1.msra.mxu0 0.0
      %824 = vmatprep.subr.mxu0 0.0
      %825 = vmatpush1.msra.mxu0 0.0
      %826 = vmatprep.subr.mxu0 0.0
      %827 = vmatpush1.msra.mxu0 0.0
      %828 = vmatprep.subr.mxu0 0.0
      %829 = vmatpush1.msra.mxu0 0.0
      %830 = vmatprep.subr.mxu0 0.0
      %831 = vmatpush1.msra.mxu0 0.0
      %832 = vmatprep.subr.mxu0 0.0
      %833 = vmatpush1.msra.mxu0 0.0
      %834 = vmatprep.subr.mxu0 0.0
      %835 = vmatpush1.msra.mxu0 0.0
      %836 = vmatprep.subr.mxu0 0.0
      %837 = vmatpush1.msra.mxu0 0.0
      %838 = vmatprep.subr.mxu0 0.0
      %839 = vmatpush1.msra.mxu0 0.0
      %840 = vmatprep.subr.mxu0 0.0
      %841 = vmatpush1.msra.mxu0 0.0
      %842 = vmatprep.subr.mxu0 0.0
      %843 = vmatpush1.msra.mxu0 0.0
      %844 = vmatprep.subr.mxu0 0.0
      %845 = vmatpush1.msra.mxu0 0.0
      %846 = vmatprep.subr.mxu0 0.0
      %847 = vmatpush1.msra.mxu0 0.0
      %848 = vmatprep.subr.mxu0 0.0
      %849 = vmatpush1.msra.mxu0 0.0
      %850 = vmatprep.subr.mxu0 0.0
      %851 = vmatpush1.msra.mxu0 0.0
      %852 = vmatprep.subr.mxu0 0.0
      %853 = vmatpush1.msra.mxu0 0.0
      %854 = vmatprep.subr.mxu0 0.0
      %855 = vmatpush1.msra.mxu0 0.0
      %856 = vmatprep.subr.mxu0 0.0
      %857 = vmatpush1.msra.mxu0 0.0
      %858 = vmatprep.subr.mxu0 0.0
      %859 = vmatpush1.msra.mxu0 0.0
      %860 = vmatprep.mubr.f32.mxu0 0.0
      %861 = vmatmul.mubr.f32.gmra.mrb[0].mxu0 %v714
      %v862 = vpop.f32.mrb[0].mxu0
      %v863 = vadd.f32 %v794, %v862
      %v864 = vpop.f32.mrb[0].mxu0
      %865 = vdwg.mxu0
      %v868 = vcombine.high %v696, %v696
      %v869 = vcombine.high %v701, %v701
      %v874 = vunpack.c.l.s4 1966171168
      %v875 = vunpack.c.0.s8 %v874
      %v876 = vlaneseq
      %v877 = vshrl.u32 %v876, 7
      %v878 = vsub.s32 %v875, %v877
      %v879 = vrot.slane %v787, %v878
      %v880 = vcombine.high %v879, %v879
      %v882 = vunpack.c.l.s4 1966171168
      %v883 = vunpack.c.0.s8 %v882
      %v884 = vlaneseq
      %v885 = vshrl.u32 %v884, 7
      %v886 = vsub.s32 %v883, %v885
      %v887 = vrot.slane %v879, %v886
      %v889 = vunpack.c.l.s4 1966171168
      %v890 = vunpack.c.0.s8 %v889
      %v891 = vlaneseq
      %v892 = vshrl.u32 %v891, 7
      %v893 = vsub.s32 %v890, %v892
      %v894 = vrot.slane %v880, %v893
      %v895 = vcombine.high %v887, %v887
      %v896 = vcombine.high %v894, %v894
      %v897 = vlaneseq
      %v898 = vshrl.u32 %v897, 7
      %v899 = vsub.s32 0, %v898
      %v900 = vrot.slane %v887, %v899
      %v901 = vlaneseq
      %v902 = vshrl.u32 %v901, 7
      %v903 = vsub.s32 0, %v902
      %v904 = vrot.slane %v894, %v903
      %v905 = vlaneseq
      %v906 = vshrl.u32 %v905, 7
      %v907 = vsub.s32 0, %v906
      %v908 = vrot.slane %v895, %v907
      %v909 = vlaneseq
      %v910 = vshrl.u32 %v909, 7
      %v911 = vsub.s32 0, %v910
      %v912 = vrot.slane %v896, %v911
      %v917 = vmul.f32 %v696, %v900
      %v918 = vmul.f32 %v868, %v904
      %v919 = vmul.f32 %v701, %v908
      %v920 = vmul.f32 %v869, %v912
      %v923 = vunpack.c.l.s4 1966171168
      %v924 = vunpack.c.0.s8 %v923
      %v925 = vlaneseq
      %v926 = vshrl.u32 %v925, 7
      %v927 = vsub.s32 %v924, %v926
      %v928 = vrot.slane %v863, %v927
      %v929 = vcombine.high %v928, %v928
      %v931 = vunpack.c.l.s4 1966171168
      %v932 = vunpack.c.0.s8 %v931
      %v933 = vlaneseq
      %v934 = vshrl.u32 %v933, 7
      %v935 = vsub.s32 %v932, %v934
      %v936 = vrot.slane %v928, %v935
      %v938 = vunpack.c.l.s4 1966171168
      %v939 = vunpack.c.0.s8 %v938
      %v940 = vlaneseq
      %v941 = vshrl.u32 %v940, 7
      %v942 = vsub.s32 %v939, %v941
      %v943 = vrot.slane %v929, %v942
      %v944 = vcombine.high %v936, %v936
      %v945 = vcombine.high %v943, %v943
      %v946 = vlaneseq
      %v947 = vshrl.u32 %v946, 7
      %v948 = vsub.s32 0, %v947
      %v949 = vrot.slane %v936, %v948
      %v950 = vlaneseq
      %v951 = vshrl.u32 %v950, 7
      %v952 = vsub.s32 0, %v951
      %v953 = vrot.slane %v943, %v952
      %v954 = vlaneseq
      %v955 = vshrl.u32 %v954, 7
      %v956 = vsub.s32 0, %v955
      %v957 = vrot.slane %v944, %v956
      %v958 = vlaneseq
      %v959 = vshrl.u32 %v958, 7
      %v960 = vsub.s32 0, %v959
      %v961 = vrot.slane %v945, %v960
      %v966 = vadd.f32 %v917, %v949
      %v967 = vadd.f32 %v918, %v953
      %v968 = vadd.f32 %v919, %v957
      %v969 = vadd.f32 %v920, %v961
      %v970 = vtanh.pop %v966
      %v971 = vtanh.pop %v967
      %v972 = vtanh.pop %v968
      %v973 = vtanh.pop %v969
      %v974 = vxor.u32 %v966, 2147483648
      %v975 = vxor.u32 %v967, 2147483648
      %v976 = vxor.u32 %v968, 2147483648
      %v977 = vxor.u32 %v969, 2147483648
      %v978 = vmul.f32 %v974, 1.442695
      %v979 = vpow.pop %v978
      %v980 = vmul.f32 %v975, 1.442695
      %v981 = vpow.pop %v980
      %v982 = vmul.f32 %v976, 1.442695
      %v983 = vpow.pop %v982
      %v984 = vmul.f32 %v977, 1.442695
      %v985 = vpow.pop %v984
      %v986 = vadd.f32 %v979, 1.0
      %v987 = vadd.f32 %v981, 1.0
      %v988 = vadd.f32 %v983, 1.0
      %v989 = vadd.f32 %v985, 1.0
      %v990 = vrcp.pop %v986
      %v991 = vmul.f32 1.0, %v990
      %v992 = vrcp.pop %v987
      %v993 = vmul.f32 1.0, %v992
      %v994 = vrcp.pop %v988
      %v995 = vmul.f32 1.0, %v994
      %v996 = vrcp.pop %v989
      %v997 = vmul.f32 1.0, %v996
      %1002 = vrot.lane.b32.xlu0 %v991, 120
      %v1003 = vpop.permute.xlu0 %1002
      %1004 = vrot.lane.b32.xlu0 %v993, 120
      %v1005 = vpop.permute.xlu0 %1004
      %1006 = vrot.lane.b32.xlu0 %v995, 120
      %v1007 = vpop.permute.xlu0 %1006
      %1008 = vrot.lane.b32.xlu0 %v997, 120
      %v1009 = vpop.permute.xlu0 %1008
      %v1014 = vmul.f32 %v970, %v1003
      %v1015 = vmul.f32 %v971, %v1005
      %v1016 = vmul.f32 %v972, %v1007
      %v1017 = vmul.f32 %v973, %v1009
      %v1018 = vld [vmem:[%s9] sm:$0xff]
      %v1019 = vld [vmem:[%s11] sm:$0x1]
      %v1021 = vlaneseq
      %v1022 = vshrl.u32 %v1021, 7
      %v1023 = vsub.s32 0, %v1022
      %v1024 = vrot.slane %v1019, %v1023
      %v1030 = vcombine.low %v1014, %v1015
      %v1031 = vcombine.low %v1016, %v1017
      %v1032 = vsel %vm606, %v1030, 0
      %v1034 = vsel %vm606, %v1031, 0
      %1036 = vmatprep.subr.mxu0 0.0
      %1037 = vmatpush1.msra.mxu0 %v1018
      %1038 = vmatprep.subr.mxu0 0.0
      %1039 = vmatpush1.msra.mxu0 0.0
      %1040 = vmatprep.subr.mxu0 0.0
      %1041 = vmatpush1.msra.mxu0 0.0
      %1042 = vmatprep.subr.mxu0 0.0
      %1043 = vmatpush1.msra.mxu0 0.0
      %1044 = vmatprep.subr.mxu0 0.0
      %1045 = vmatpush1.msra.mxu0 0.0
      %1046 = vmatprep.subr.mxu0 0.0
      %1047 = vmatpush1.msra.mxu0 0.0
      %1048 = vmatprep.subr.mxu0 0.0
      %1049 = vmatpush1.msra.mxu0 0.0
      %1050 = vmatprep.subr.mxu0 0.0
      %1051 = vmatpush1.msra.mxu0 0.0
      %1052 = vmatprep.subr.mxu0 0.0
      %1053 = vmatpush1.msra.mxu0 0.0
      %1054 = vmatprep.subr.mxu0 0.0
      %1055 = vmatpush1.msra.mxu0 0.0
      %1056 = vmatprep.subr.mxu0 0.0
      %1057 = vmatpush1.msra.mxu0 0.0
      %1058 = vmatprep.subr.mxu0 0.0
      %1059 = vmatpush1.msra.mxu0 0.0
      %1060 = vmatprep.subr.mxu0 0.0
      %1061 = vmatpush1.msra.mxu0 0.0
      %1062 = vmatprep.subr.mxu0 0.0
      %1063 = vmatpush1.msra.mxu0 0.0
      %1064 = vmatprep.subr.mxu0 0.0
      %1065 = vmatpush1.msra.mxu0 0.0
      %1066 = vmatprep.subr.mxu0 0.0
      %1067 = vmatpush1.msra.mxu0 0.0
      %1068 = vmatprep.subr.mxu0 0.0
      %1069 = vmatpush1.msra.mxu0 0.0
      %1070 = vmatprep.subr.mxu0 0.0
      %1071 = vmatpush1.msra.mxu0 0.0
      %1072 = vmatprep.subr.mxu0 0.0
      %1073 = vmatpush1.msra.mxu0 0.0
      %1074 = vmatprep.subr.mxu0 0.0
      %1075 = vmatpush1.msra.mxu0 0.0
      %1076 = vmatprep.subr.mxu0 0.0
      %1077 = vmatpush1.msra.mxu0 0.0
      %1078 = vmatprep.subr.mxu0 0.0
      %1079 = vmatpush1.msra.mxu0 0.0
      %1080 = vmatprep.subr.mxu0 0.0
      %1081 = vmatpush1.msra.mxu0 0.0
      %1082 = vmatprep.subr.mxu0 0.0
      %1083 = vmatpush1.msra.mxu0 0.0
      %1084 = vmatprep.subr.mxu0 0.0
      %1085 = vmatpush1.msra.mxu0 0.0
      %1086 = vmatprep.subr.mxu0 0.0
      %1087 = vmatpush1.msra.mxu0 0.0
      %1088 = vmatprep.subr.mxu0 0.0
      %1089 = vmatpush1.msra.mxu0 0.0
      %1090 = vmatprep.subr.mxu0 0.0
      %1091 = vmatpush1.msra.mxu0 0.0
      %1092 = vmatprep.subr.mxu0 0.0
      %1093 = vmatpush1.msra.mxu0 0.0
      %1094 = vmatprep.subr.mxu0 0.0
      %1095 = vmatpush1.msra.mxu0 0.0
      %1096 = vmatprep.subr.mxu0 0.0
      %1097 = vmatpush1.msra.mxu0 0.0
      %1098 = vmatprep.subr.mxu0 0.0
      %1099 = vmatpush1.msra.mxu0 0.0
      %1100 = vmatprep.mubr.f32.mxu0 0.0
      %1101 = vmatmul.mubr.f32.gmra.mrb[0].mxu0 %v1032
      %v1102 = vpop.f32.mrb[0].mxu0
      %v1103 = vadd.f32 %v1024, %v1102
      %v1104 = vpop.f32.mrb[0].mxu0
      %1105 = vmatprep.mubr.f32.mxu0 0.0
      %1106 = vmatmul.mubr.f32.gmra.mrb[0].mxu0 %v1034
      %v1107 = vpop.f32.mrb[0].mxu0
      %v1108 = vadd.f32 %v1024, %v1107
      %v1109 = vpop.f32.mrb[0].mxu0
      %1110 = vdwg.mxu0
      %v1111 = vld [vmem:[%s10] sm:$0xff]
      %v1112 = vld [vmem:[%s12] sm:$0x1]
      %v1114 = vlaneseq
      %v1115 = vshrl.u32 %v1114, 7
      %v1116 = vsub.s32 0, %v1115
      %v1117 = vrot.slane %v1112, %v1116
      %1119 = vmatprep.subr.mxu0 0.0
      %1120 = vmatpush1.msra.mxu0 %v1111
      %1121 = vmatprep.subr.mxu0 0.0
      %1122 = vmatpush1.msra.mxu0 0.0
      %1123 = vmatprep.subr.mxu0 0.0
      %1124 = vmatpush1.msra.mxu0 0.0
      %1125 = vmatprep.subr.mxu0 0.0
      %1126 = vmatpush1.msra.mxu0 0.0
      %1127 = vmatprep.subr.mxu0 0.0
      %1128 = vmatpush1.msra.mxu0 0.0
      %1129 = vmatprep.subr.mxu0 0.0
      %1130 = vmatpush1.msra.mxu0 0.0
      %1131 = vmatprep.subr.mxu0 0.0
      %1132 = vmatpush1.msra.mxu0 0.0
      %1133 = vmatprep.subr.mxu0 0.0
      %1134 = vmatpush1.msra.mxu0 0.0
      %1135 = vmatprep.subr.mxu0 0.0
      %1136 = vmatpush1.msra.mxu0 0.0
      %1137 = vmatprep.subr.mxu0 0.0
      %1138 = vmatpush1.msra.mxu0 0.0
      %1139 = vmatprep.subr.mxu0 0.0
      %1140 = vmatpush1.msra.mxu0 0.0
      %1141 = vmatprep.subr.mxu0 0.0
      %1142 = vmatpush1.msra.mxu0 0.0
      %1143 = vmatprep.subr.mxu0 0.0
      %1144 = vmatpush1.msra.mxu0 0.0
      %1145 = vmatprep.subr.mxu0 0.0
      %1146 = vmatpush1.msra.mxu0 0.0
      %1147 = vmatprep.subr.mxu0 0.0
      %1148 = vmatpush1.msra.mxu0 0.0
      %1149 = vmatprep.subr.mxu0 0.0
      %1150 = vmatpush1.msra.mxu0 0.0
      %1151 = vmatprep.subr.mxu0 0.0
      %1152 = vmatpush1.msra.mxu0 0.0
      %1153 = vmatprep.subr.mxu0 0.0
      %1154 = vmatpush1.msra.mxu0 0.0
      %1155 = vmatprep.subr.mxu0 0.0
      %1156 = vmatpush1.msra.mxu0 0.0
      %1157 = vmatprep.subr.mxu0 0.0
      %1158 = vmatpush1.msra.mxu0 0.0
      %1159 = vmatprep.subr.mxu0 0.0
      %1160 = vmatpush1.msra.mxu0 0.0
      %1161 = vmatprep.subr.mxu0 0.0
      %1162 = vmatpush1.msra.mxu0 0.0
      %1163 = vmatprep.subr.mxu0 0.0
      %1164 = vmatpush1.msra.mxu0 0.0
      %1165 = vmatprep.subr.mxu0 0.0
      %1166 = vmatpush1.msra.mxu0 0.0
      %1167 = vmatprep.subr.mxu0 0.0
      %1168 = vmatpush1.msra.mxu0 0.0
      %1169 = vmatprep.subr.mxu0 0.0
      %1170 = vmatpush1.msra.mxu0 0.0
      %1171 = vmatprep.subr.mxu0 0.0
      %1172 = vmatpush1.msra.mxu0 0.0
      %1173 = vmatprep.subr.mxu0 0.0
      %1174 = vmatpush1.msra.mxu0 0.0
      %1175 = vmatprep.subr.mxu0 0.0
      %1176 = vmatpush1.msra.mxu0 0.0
      %1177 = vmatprep.subr.mxu0 0.0
      %1178 = vmatpush1.msra.mxu0 0.0
      %1179 = vmatprep.subr.mxu0 0.0
      %1180 = vmatpush1.msra.mxu0 0.0
      %1181 = vmatprep.subr.mxu0 0.0
      %1182 = vmatpush1.msra.mxu0 0.0
      %1183 = vmatprep.mubr.f32.mxu0 0.0
      %1184 = vmatmul.mubr.f32.gmra.mrb[0].mxu0 %v1032
      %v1185 = vpop.f32.mrb[0].mxu0
      %v1186 = vadd.f32 %v1117, %v1185
      %v1187 = vpop.f32.mrb[0].mxu0
      %1188 = vmatprep.mubr.f32.mxu0 0.0
      %1189 = vmatmul.mubr.f32.gmra.mrb[0].mxu0 %v1034
      %v1190 = vpop.f32.mrb[0].mxu0
      %v1191 = vadd.f32 %v1117, %v1190
      %v1192 = vpop.f32.mrb[0].mxu0
      %1193 = vdwg.mxu0
      %v1196 = vadd.f32 %v1103, %v585
      %v1197 = vadd.f32 %v1108, %v587
      %v1198 = vmul.f32 %v1196, 0.5
      %v1199 = vmul.f32 %v1197, 0.5
      %1200 = vst.msk [vmem:[%s564] sm:$0xff] %vm606, %v1198
      %1201 = vst.msk [vmem:[%s564 + $0x8] sm:$0xff] %vm606, %v1199
      %1202 = vst.msk [vmem:[%s574] sm:$0xff] %vm606, %v1186
      %1203 = vst.msk [vmem:[%s574 + $0x8] sm:$0xff] %vm606, %v1191
      %s1204 = smul.u32 2, %s31
      %p1205 = scmp.lt.s32.totalorder %s30, 1
      %s1206 = scalar_select %p1205, %s30, 1
      %p1207 = scmp.lt.s32.totalorder %s1204, 1
      %s1208 = scalar_select %p1207, %s1204, 1
      %s1209 = smul.addr %s1206, 2
      %s1210 = sadd.s32 %s1208, %s1209
      %s1211 = smul.addr %s1210, 8
      %s1212 = scalar_lea.vmem %s13, %s1211
      %s1213 = smul.u32 2, %s31
      %p1214 = scmp.lt.s32.totalorder %s30, 1
      %s1215 = scalar_select %p1214, %s30, 1
      %p1216 = scmp.lt.s32.totalorder %s1213, 1
      %s1217 = scalar_select %p1216, %s1213, 1
      %s1218 = smul.addr %s1215, 2
      %s1219 = sadd.s32 %s1217, %s1218
      %s1220 = smul.addr %s1219, 8
      %s1221 = scalar_lea.vmem %s14, %s1220
      // Predicated region
      $region73: #{tpu_custom_call.1} parent=71 // pred_check
        %p1222 = pneg %p350
      $region74: #{tpu_custom_call.1} parent=71 // pred_check_branch
        %1224 = sbr.rel (%p1222) target = $region76
      $region75: #{tpu_custom_call.1} parent=71 // pred_region
        %s1225 = smul.u32 2, %s31
      $region76: #{tpu_custom_call.1} parent=71 // pred_fallthru
        _
      // Predicated region
      $region77: #{tpu_custom_call.1} parent=71 // pred_check
        %p1226 = pneg %p378
      $region78: #{tpu_custom_call.1} parent=71 // pred_check_branch
        %1228 = sbr.rel (%p1226) target = $region80
      $region79: #{tpu_custom_call.1} parent=71 // pred_region
        %s1229 = smul.u32 2, %s31
      $region80: #{tpu_custom_call.1} parent=71 // pred_fallthru
        _
    $region72: #{tpu_custom_call.1} parent=5 // pred_fallthru
      _
    %p1230 = scmp.le.s32.totalorder 2, %s21
    // Predicated region
    $region81: #{tpu_custom_call.1} parent=5 // pred_check
      %p1231 = pneg %p1230
    $region82: #{tpu_custom_call.1} parent=5 // pred_check_branch
      %1233 = sbr.rel (%p1231) target = $region84
    $region83: #{tpu_custom_call.1} parent=5 // pred_region
      %s1234 = ssub.s32 %s21, 2
      // Predicated region
      $region85: #{tpu_custom_call.1} parent=83 // pred_check
        %p1235 = pneg %p356
      $region86: #{tpu_custom_call.1} parent=83 // pred_check_branch
        %1237 = sbr.rel (%p1235) target = $region88
      $region87: #{tpu_custom_call.1} parent=83 // pred_region
        %s1238 = smul.u32 2, %s33
        %p1239 = scmp.lt.s32.totalorder %s32, 1
        %s1240 = scalar_select %p1239, %s32, 1
        %p1241 = scmp.lt.s32.totalorder %s1238, 1
        %s1242 = scalar_select %p1241, %s1238, 1
        %s1243 = smul.addr %s1240, 2
        %s1244 = sadd.s32 %s1242, %s1243
        %s1245 = smul.addr %s1244, 8
        %s1246 = scalar_lea.vmem %s13, %s1245
      $region88: #{tpu_custom_call.1} parent=83 // pred_fallthru
        _
      // Predicated region
      $region89: #{tpu_custom_call.1} parent=83 // pred_check
        %p1247 = pneg %p384
      $region90: #{tpu_custom_call.1} parent=83 // pred_check_branch
        %1249 = sbr.rel (%p1247) target = $region92
      $region91: #{tpu_custom_call.1} parent=83 // pred_region
        %s1250 = smul.u32 2, %s33
        %p1251 = scmp.lt.s32.totalorder %s32, 1
        %s1252 = scalar_select %p1251, %s32, 1
        %p1253 = scmp.lt.s32.totalorder %s1250, 1
        %s1254 = scalar_select %p1253, %s1250, 1
        %s1255 = smul.addr %s1252, 2
        %s1256 = sadd.s32 %s1254, %s1255
        %s1257 = smul.addr %s1256, 8
        %s1258 = scalar_lea.vmem %s14, %s1257
      $region92: #{tpu_custom_call.1} parent=83 // pred_fallthru
        _
    $region84: #{tpu_custom_call.1} parent=5 // pred_fallthru
      _
  $region6: #{tpu_custom_call.1} parent=0 // loop_footer
    %s25 = sadd.s32 1, %s21
  $region7: #{tpu_custom_call.1} parent=0 // loop_footer_branch
    %20 = sbr.rel target = $region3
  $region8: #{tpu_custom_call.1} parent=0 // loop_exit
    _

</llo_original>
